<compile_context>
chip_gen: v7x
topology: tpu7x:2x2x1
jax: 0.10.0
libtpu: 0.0.40
codegen_flags: <defaults>
</compile_context>

<pallas_src>
import functools

import numpy as np
import jax
import jax.numpy as jnp
from jax.experimental import pallas as pl
from jax.experimental.pallas import tpu as pltpu

LANES = 128           # surface columns per row (vreg lane width)
ROWS_PER_TILE = 8     # surface rows per grid step (one (8,128) vreg tile)
CHUNK = 128           # events processed per inner-loop step


def _surface_kernel(idx_ref, t_ref, counts_ref, tst_ref, *, n_chunks,
                    rows_per_tile):
    """One grid step fills surface rows [j*R, (j+1)*R) of the (rows, 128) view.

    counts_ref: (R, 128)   natural orientation (lane-dense, unmasked stores)
    tst_ref:    (128, R)   transposed ts tile (scol on sublanes, row on lanes)
    """
    j = pl.program_id(0)
    row_off = j * rows_per_tile

    counts_ref[...] = jnp.zeros_like(counts_ref)
    tst_ref[...] = jnp.zeros_like(tst_ref)

    # target surface-row ids of this tile and the 128 surface-column ids
    row_ids = row_off + jax.lax.broadcasted_iota(
        jnp.int32, (rows_per_tile, 1), 0)                      # (R, 1)
    col_ids = jax.lax.broadcasted_iota(jnp.int32, (LANES, 1), 0)  # (128, 1)

    @pl.loop(0, n_chunks)
    def _(c):
        idx = idx_ref[pl.ds(c, 1), :]            # (1, CHUNK) int32 (padded: huge)
        t = t_ref[pl.ds(c, 1), :]                # (1, CHUNK) f32

        srow = idx >> 7                          # idx // 128  (LANES == 128)
        scol = idx & (LANES - 1)                 # idx % 128

        a = srow == row_ids                      # (R, CHUNK)   row one-hot
        bc = scol == col_ids                     # (128, CHUNK) col one-hot

        # scatter_add(ones): MXU outer product, contracting the event axis
        # (same dot_general pattern as q @ k^T in attention).
        counts_ref[...] += jax.lax.dot_general(
            a.astype(jnp.float32), bc.astype(jnp.float32),
            dimension_numbers=(((1,), (1,)), ((), ())),
            preferred_element_type=jnp.float32)

        # scatter_max(t): masked max per tile row -> (128, 1) column of the
        # transposed ts tile (identity 0, matching .at[idx].max on zeros).
        for r in range(rows_per_tile):
            m = jnp.logical_and(bc, a[r:r + 1, :])               # (128, CHUNK)
            col = jnp.max(jnp.where(m, t, 0.0), axis=1, keepdims=True)
            tst_ref[:, r:r + 1] = jnp.maximum(tst_ref[:, r:r + 1], col)


def handcrafted_surface(events, lengths, *, h, w, bins,
                        rows_per_tile=ROWS_PER_TILE, chunk=CHUNK):
    """events: (N, 5) float columns [x, y, t, p, b]; returns (counts, last_ts),
    each of shape (B, 2*bins, h, w) float32 (NCHW, channel = bin*2 + p)."""
    B = int(lengths.shape[0])                     # no host sync on b[-1]

    x = events[:, 0].astype(jnp.int32)
    y = events[:, 1].astype(jnp.int32)
    t = events[:, 2].astype(jnp.float32)
    p = events[:, 3].astype(jnp.int32)
    b = events[:, 4].astype(jnp.int32)

    # get_idx() t-normalization (guard divide-by-zero on degenerate batches)
    b_maxs = jax.ops.segment_max(t, b, num_segments=B)
    maxs = b_maxs[b]
    maxs = jnp.where(maxs != 0, maxs, 1.0)
    needs_norm = (t.min() < 0) | (t.max() > 1)
    t = jnp.where(needs_norm, t / maxs, t)

    # hoisted idx computation (done once, not per grid step)
    bn = jnp.clip((t * bins).astype(jnp.int32), 0, bins - 1)
    idx = (x + y * w + p * (h * w) + bn * (2 * h * w)
           + b * (bins * 2 * h * w)).astype(jnp.int32)

    num_out = B * bins * 2 * h * w
    nr = -(-num_out // LANES)                           # surface rows
    nr_pad = int(np.ceil(nr / rows_per_tile) * rows_per_tile)
    num_tiles = nr_pad // rows_per_tile

    # lane-dense event packing; padded events get an out-of-range idx
    n = idx.shape[0]
    n_pad = int(np.ceil(n / chunk) * chunk)
    n_chunks = n_pad // chunk
    fill = nr_pad * LANES                               # srow == nr_pad: no match
    idx_p = jnp.pad(idx, (0, n_pad - n), constant_values=fill)
    t_p = jnp.pad(t, (0, n_pad - n))
    idx_p = idx_p.reshape(n_chunks, chunk)
    t_p = t_p.reshape(n_chunks, chunk)

    kernel = functools.partial(_surface_kernel, n_chunks=n_chunks,
                               rows_per_tile=rows_per_tile)
    ev_spec = pl.BlockSpec((n_chunks, chunk), lambda j: (0, 0))

    counts2d, tst = pl.pallas_call(
        kernel,
        out_shape=(jax.ShapeDtypeStruct((nr_pad, LANES), jnp.float32),
                   jax.ShapeDtypeStruct((num_tiles, LANES, rows_per_tile),
                                        jnp.float32)),
        grid=(num_tiles,),
        in_specs=[ev_spec, ev_spec],
        out_specs=(pl.BlockSpec((rows_per_tile, LANES), lambda j: (j, 0)),
                   pl.BlockSpec((None, LANES, rows_per_tile),
                                lambda j: (j, 0, 0))),
        compiler_params=pltpu.CompilerParams(
            dimension_semantics=("parallel",),
            vmem_limit_bytes=64 * 1024 * 1024),
    )(idx_p, t_p)

    counts = counts2d.reshape(-1)[:num_out].reshape(B, bins * 2, h, w)
    # tst[j, scol, r] holds surface cell (j*R + r, scol): un-transpose in JAX
    last_ts = (jnp.transpose(tst, (0, 2, 1)).reshape(-1)[:num_out]
               .reshape(B, bins * 2, h, w))
    return counts, last_ts


if __name__ == "__main__":
    H, W, BINS = 16, 16, 2
    lengths = jnp.array([120, 136], dtype=jnp.int32)
    B = int(lengths.shape[0])
    N = int(np.sum(np.asarray(lengths)))

    key = jax.random.PRNGKey(0)
    k1, k2, k3, k4 = jax.random.split(key, 4)
    x = jax.random.randint(k1, (N,), 0, W)
    y = jax.random.randint(k2, (N,), 0, H)
    # t in [0, 2) so the per-batch normalization branch is exercised
    t = jax.random.uniform(k3, (N,), minval=0.0, maxval=2.0)
    p = jax.random.randint(k4, (N,), 0, 2)
    b = jnp.asarray(np.repeat(np.arange(B), np.asarray(lengths)))

    events = jnp.stack([x.astype(jnp.float32), y.astype(jnp.float32), t,
                        p.astype(jnp.float32), b.astype(jnp.float32)], axis=1)

    counts, last_ts = handcrafted_surface(events, lengths, h=H, w=W, bins=BINS)
    jax.block_until_ready((counts, last_ts))

    # ---- pure-JAX reference (mirrors the torch semantics) ----
    xi, yi, pi, bi = (events[:, 0].astype(jnp.int32), events[:, 1].astype(jnp.int32),
                      events[:, 3].astype(jnp.int32), events[:, 4].astype(jnp.int32))
    tf = events[:, 2]
    b_maxs = jax.ops.segment_max(tf, bi, num_segments=B)
    tn = jnp.where((tf.min() < 0) | (tf.max() > 1), tf / b_maxs[bi], tf)
    bn = jnp.clip((tn * BINS).astype(jnp.int32), 0, BINS - 1)
    idx = xi + yi * W + pi * H * W + bn * 2 * H * W + bi * BINS * 2 * H * W
    num_out = B * BINS * 2 * H * W
    ref_counts = jnp.zeros(num_out, jnp.float32).at[idx].add(1.0).reshape(B, 2 * BINS, H, W)
    ref_ts = jnp.zeros(num_out, jnp.float32).at[idx].max(tn).reshape(B, 2 * BINS, H, W)

    np.testing.assert_allclose(np.asarray(counts), np.asarray(ref_counts), atol=1e-6)
    np.testing.assert_allclose(np.asarray(last_ts), np.asarray(ref_ts), atol=1e-6)

    print("KERNEL_OK")
</pallas_src>

<mosaic_0001>
module attributes {stable_mosaic.version = 11 : i64} {
  func.func @_surface_kernel(%arg0: i32, %arg1: memref<2x128xi32, #tpu.memory_space<vmem>>, %arg2: memref<2x128xf32, #tpu.memory_space<vmem>>, %arg3: memref<8x128xf32, #tpu.memory_space<vmem>>, %arg4: memref<1x128x8xf32, #tpu.memory_space<vmem>>) attributes {dimension_semantics = [#tpu.dimension_semantics<parallel>], iteration_bounds = array<i64: 2>, scalar_prefetch = 0 : i64, scratch_operands = 0 : i64, tpu.core_type = #tpu.core_type<tc>, window_params = [{pipeline_mode = #tpu.pipeline_mode<synchronous>, transform_indices = @transform_0, window_bounds = array<i64: 2, 128>}, {pipeline_mode = #tpu.pipeline_mode<synchronous>, transform_indices = @transform_1, window_bounds = array<i64: 2, 128>}, {transform_indices = @transform_2, window_bounds = array<i64: 8, 128>}, {transform_indices = @transform_3, window_bounds = array<i64: 1, 128, 8>}]} {
    %c8_i32 = arith.constant 8 : i32
    %0 = arith.muli %arg0, %c8_i32 : i32
    %cst = arith.constant 0.000000e+00 : f32
    %1 = vector.broadcast %cst : f32 to vector<8x128xf32>
    %c0 = arith.constant 0 : index
    %c0_0 = arith.constant 0 : index
    %2 = vector.load %arg3[%c0, %c0_0] : memref<8x128xf32, #tpu.memory_space<vmem>>, vector<8x128xf32>
    tpu.vector_store %arg3[%c0, %c0_0], %1 {strides = array<i32>} : memref<8x128xf32, #tpu.memory_space<vmem>>, vector<8x128xf32>,
    %cst_1 = arith.constant 0.000000e+00 : f32
    %3 = vector.broadcast %cst_1 : f32 to vector<128x8xf32>
    %c0_2 = arith.constant 0 : index
    %c0_3 = arith.constant 0 : index
    %c0_4 = arith.constant 0 : index
    %4 = vector.load %arg4[%c0_2, %c0_3, %c0_4] : memref<1x128x8xf32, #tpu.memory_space<vmem>>, vector<1x128x8xf32>
    %5 = vector.shape_cast %4 : vector<1x128x8xf32> to vector<128x8xf32>
    %6 = vector.shape_cast %3 : vector<128x8xf32> to vector<1x128x8xf32>
    tpu.vector_store %arg4[%c0_2, %c0_3, %c0_4], %6 {strides = array<i32>} : memref<1x128x8xf32, #tpu.memory_space<vmem>>, vector<1x128x8xf32>,
    %7 = tpu.iota {dimensions = array<i32: 0>} : vector<8x1xi32>
    %8 = vector.broadcast %0 : i32 to vector<8x1xi32>
    %9 = arith.addi %8, %7 : vector<8x1xi32>
    %10 = tpu.iota {dimensions = array<i32: 0>} : vector<128x1xi32>
    %c0_i32 = arith.constant 0 : i32
    %c2_i32 = arith.constant 2 : i32
    %11 = arith.addi %c0_i32, %c2_i32 : i32
    %c1_i32 = arith.constant 1 : i32
    scf.for %arg5 = %c0_i32 to %11 step %c1_i32  : i32 {
      %c1_i32_6 = arith.constant 1 : i32
      %12 = arith.muli %arg5, %c1_i32_6 : i32
      %c0_i32_7 = arith.constant 0 : i32
      %13 = arith.addi %c0_i32_7, %12 : i32
      %14 = arith.index_cast %13 : i32 to index
      %c0_8 = arith.constant 0 : index
      %15 = vector.load %arg1[%14, %c0_8] : memref<2x128xi32, #tpu.memory_space<vmem>>, vector<1x128xi32>
      %16 = arith.index_cast %13 : i32 to index
      %c0_9 = arith.constant 0 : index
      %17 = vector.load %arg2[%16, %c0_9] : memref<2x128xf32, #tpu.memory_space<vmem>>, vector<1x128xf32>
      %c7_i32 = arith.constant 7 : i32
      %18 = vector.broadcast %c7_i32 : i32 to vector<1x128xi32>
      %19 = arith.shrsi %15, %18 : vector<1x128xi32>
      %c127_i32 = arith.constant 127 : i32
      %20 = vector.broadcast %c127_i32 : i32 to vector<1x128xi32>
      %21 = arith.andi %15, %20 : vector<1x128xi32>
      %22 = vector.broadcast %19 : vector<1x128xi32> to vector<8x128xi32>
      %23 = vector.broadcast %9 : vector<8x1xi32> to vector<8x128xi32>
      %24 = arith.cmpi eq, %22, %23 : vector<8x128xi32>
      %25 = vector.broadcast %21 : vector<1x128xi32> to vector<128x128xi32>
      %26 = vector.broadcast %10 : vector<128x1xi32> to vector<128x128xi32>
      %27 = arith.cmpi eq, %25, %26 : vector<128x128xi32>
      %c0_10 = arith.constant 0 : index
      %c0_11 = arith.constant 0 : index
      %28 = vector.load %arg3[%c0_10, %c0_11] : memref<8x128xf32, #tpu.memory_space<vmem>>, vector<8x128xf32>
      %29 = arith.extui %24 : vector<8x128xi1> to vector<8x128xi32>
      %30 = arith.sitofp %29 : vector<8x128xi32> to vector<8x128xf32>
      %31 = arith.extui %27 : vector<128x128xi1> to vector<128x128xi32>
      %32 = arith.sitofp %31 : vector<128x128xi32> to vector<128x128xf32>
      %cst_12 = arith.constant dense<0.000000e+00> : vector<8x128xf32>
      %33 = tpu.matmul %30, %32, %cst_12 {dimension_numbers = #tpu.dot_dimension_numbers<[1], [1], [0], [0], [0, 0, 1, 0], [], []>} : vector<8x128xf32>, vector<128x128xf32>, vector<8x128xf32> -> vector<8x128xf32>
      %34 = arith.addf %28, %33 : vector<8x128xf32>
      %c0_13 = arith.constant 0 : index
      %c0_14 = arith.constant 0 : index
      %35 = vector.load %arg3[%c0_13, %c0_14] : memref<8x128xf32, #tpu.memory_space<vmem>>, vector<8x128xf32>
      tpu.vector_store %arg3[%c0_13, %c0_14], %34 {strides = array<i32>} : memref<8x128xf32, #tpu.memory_space<vmem>>, vector<8x128xf32>,
      %36 = vector.extract_strided_slice %24 {offsets = [0, 0], sizes = [1, 128], strides = [1, 1]} : vector<8x128xi1> to vector<1x128xi1>
      %37 = vector.broadcast %36 : vector<1x128xi1> to vector<128x128xi1>
      %38 = arith.andi %27, %37 : vector<128x128xi1>
      %cst_15 = arith.constant 0.000000e+00 : f32
      %39 = vector.shape_cast %17 : vector<1x128xf32> to vector<1x128xf32>
      %40 = vector.broadcast %39 : vector<1x128xf32> to vector<128x128xf32>
      %41 = vector.broadcast %cst_15 : f32 to vector<128x128xf32>
      %42 = arith.select %38, %40, %41 : vector<128x128xi1>, vector<128x128xf32>
      %cst_16 = arith.constant dense<0xFF800000> : vector<128xf32>
      %43 = vector.multi_reduction <maximumf>, %42, %cst_16 [1] : vector<128x128xf32> to vector<128xf32>
      %44 = vector.shape_cast %43 : vector<128xf32> to vector<128x1xf32>
      %c0_17 = arith.constant 0 : index
      %c0_18 = arith.constant 0 : index
      %c0_19 = arith.constant 0 : index
      %45 = vector.load %arg4[%c0_17, %c0_18, %c0_19] : memref<1x128x8xf32, #tpu.memory_space<vmem>>, vector<1x128x1xf32>
      %46 = vector.shape_cast %45 : vector<1x128x1xf32> to vector<128x1xf32>
      %47 = arith.maximumf %46, %44 : vector<128x1xf32>
      %c0_20 = arith.constant 0 : index
      %c0_21 = arith.constant 0 : index
      %c0_22 = arith.constant 0 : index
      %48 = vector.load %arg4[%c0_20, %c0_21, %c0_22] : memref<1x128x8xf32, #tpu.memory_space<vmem>>, vector<1x128x1xf32>
      %49 = vector.shape_cast %48 : vector<1x128x1xf32> to vector<128x1xf32>
      %50 = vector.shape_cast %47 : vector<128x1xf32> to vector<1x128x1xf32>
      tpu.vector_store %arg4[%c0_20, %c0_21, %c0_22], %50 {strides = array<i32>} : memref<1x128x8xf32, #tpu.memory_space<vmem>>, vector<1x128x1xf32>,
      %51 = vector.extract_strided_slice %24 {offsets = [1, 0], sizes = [1, 128], strides = [1, 1]} : vector<8x128xi1> to vector<1x128xi1>
      %52 = vector.broadcast %51 : vector<1x128xi1> to vector<128x128xi1>
      %53 = arith.andi %27, %52 : vector<128x128xi1>
      %cst_23 = arith.constant 0.000000e+00 : f32
      %54 = vector.shape_cast %17 : vector<1x128xf32> to vector<1x128xf32>
      %55 = vector.broadcast %54 : vector<1x128xf32> to vector<128x128xf32>
      %56 = vector.broadcast %cst_23 : f32 to vector<128x128xf32>
      %57 = arith.select %53, %55, %56 : vector<128x128xi1>, vector<128x128xf32>
      %cst_24 = arith.constant dense<0xFF800000> : vector<128xf32>
      %58 = vector.multi_reduction <maximumf>, %57, %cst_24 [1] : vector<128x128xf32> to vector<128xf32>
      %59 = vector.shape_cast %58 : vector<128xf32> to vector<128x1xf32>
      %c0_25 = arith.constant 0 : index
      %c0_26 = arith.constant 0 : index
      %c1 = arith.constant 1 : index
      %60 = vector.load %arg4[%c0_25, %c0_26, %c1] : memref<1x128x8xf32, #tpu.memory_space<vmem>>, vector<1x128x1xf32>
      %61 = vector.shape_cast %60 : vector<1x128x1xf32> to vector<128x1xf32>
      %62 = arith.maximumf %61, %59 : vector<128x1xf32>
      %c0_27 = arith.constant 0 : index
      %c0_28 = arith.constant 0 : index
      %c1_29 = arith.constant 1 : index
      %63 = vector.load %arg4[%c0_27, %c0_28, %c1_29] : memref<1x128x8xf32, #tpu.memory_space<vmem>>, vector<1x128x1xf32>
      %64 = vector.shape_cast %63 : vector<1x128x1xf32> to vector<128x1xf32>
      %65 = vector.shape_cast %62 : vector<128x1xf32> to vector<1x128x1xf32>
      tpu.vector_store %arg4[%c0_27, %c0_28, %c1_29], %65 {strides = array<i32>} : memref<1x128x8xf32, #tpu.memory_space<vmem>>, vector<1x128x1xf32>,
      %66 = vector.extract_strided_slice %24 {offsets = [2, 0], sizes = [1, 128], strides = [1, 1]} : vector<8x128xi1> to vector<1x128xi1>
      %67 = vector.broadcast %66 : vector<1x128xi1> to vector<128x128xi1>
      %68 = arith.andi %27, %67 : vector<128x128xi1>
      %cst_30 = arith.constant 0.000000e+00 : f32
      %69 = vector.shape_cast %17 : vector<1x128xf32> to vector<1x128xf32>
      %70 = vector.broadcast %69 : vector<1x128xf32> to vector<128x128xf32>
      %71 = vector.broadcast %cst_30 : f32 to vector<128x128xf32>
      %72 = arith.select %68, %70, %71 : vector<128x128xi1>, vector<128x128xf32>
      %cst_31 = arith.constant dense<0xFF800000> : vector<128xf32>
      %73 = vector.multi_reduction <maximumf>, %72, %cst_31 [1] : vector<128x128xf32> to vector<128xf32>
      %74 = vector.shape_cast %73 : vector<128xf32> to vector<128x1xf32>
      %c0_32 = arith.constant 0 : index
      %c0_33 = arith.constant 0 : index
      %c2 = arith.constant 2 : index
      %75 = vector.load %arg4[%c0_32, %c0_33, %c2] : memref<1x128x8xf32, #tpu.memory_space<vmem>>, vector<1x128x1xf32>
      %76 = vector.shape_cast %75 : vector<1x128x1xf32> to vector<128x1xf32>
      %77 = arith.maximumf %76, %74 : vector<128x1xf32>
      %c0_34 = arith.constant 0 : index
      %c0_35 = arith.constant 0 : index
      %c2_36 = arith.constant 2 : index
      %78 = vector.load %arg4[%c0_34, %c0_35, %c2_36] : memref<1x128x8xf32, #tpu.memory_space<vmem>>, vector<1x128x1xf32>
      %79 = vector.shape_cast %78 : vector<1x128x1xf32> to vector<128x1xf32>
      %80 = vector.shape_cast %77 : vector<128x1xf32> to vector<1x128x1xf32>
      tpu.vector_store %arg4[%c0_34, %c0_35, %c2_36], %80 {strides = array<i32>} : memref<1x128x8xf32, #tpu.memory_space<vmem>>, vector<1x128x1xf32>,
      %81 = vector.extract_strided_slice %24 {offsets = [3, 0], sizes = [1, 128], strides = [1, 1]} : vector<8x128xi1> to vector<1x128xi1>
      %82 = vector.broadcast %81 : vector<1x128xi1> to vector<128x128xi1>
      %83 = arith.andi %27, %82 : vector<128x128xi1>
      %cst_37 = arith.constant 0.000000e+00 : f32
      %84 = vector.shape_cast %17 : vector<1x128xf32> to vector<1x128xf32>
      %85 = vector.broadcast %84 : vector<1x128xf32> to vector<128x128xf32>
      %86 = vector.broadcast %cst_37 : f32 to vector<128x128xf32>
      %87 = arith.select %83, %85, %86 : vector<128x128xi1>, vector<128x128xf32>
      %cst_38 = arith.constant dense<0xFF800000> : vector<128xf32>
      %88 = vector.multi_reduction <maximumf>, %87, %cst_38 [1] : vector<128x128xf32> to vector<128xf32>
      %89 = vector.shape_cast %88 : vector<128xf32> to vector<128x1xf32>
      %c0_39 = arith.constant 0 : index
      %c0_40 = arith.constant 0 : index
      %c3 = arith.constant 3 : index
      %90 = vector.load %arg4[%c0_39, %c0_40, %c3] : memref<1x128x8xf32, #tpu.memory_space<vmem>>, vector<1x128x1xf32>
      %91 = vector.shape_cast %90 : vector<1x128x1xf32> to vector<128x1xf32>
      %92 = arith.maximumf %91, %89 : vector<128x1xf32>
      %c0_41 = arith.constant 0 : index
      %c0_42 = arith.constant 0 : index
      %c3_43 = arith.constant 3 : index
      %93 = vector.load %arg4[%c0_41, %c0_42, %c3_43] : memref<1x128x8xf32, #tpu.memory_space<vmem>>, vector<1x128x1xf32>
      %94 = vector.shape_cast %93 : vector<1x128x1xf32> to vector<128x1xf32>
      %95 = vector.shape_cast %92 : vector<128x1xf32> to vector<1x128x1xf32>
      tpu.vector_store %arg4[%c0_41, %c0_42, %c3_43], %95 {strides = array<i32>} : memref<1x128x8xf32, #tpu.memory_space<vmem>>, vector<1x128x1xf32>,
      %96 = vector.extract_strided_slice %24 {offsets = [4, 0], sizes = [1, 128], strides = [1, 1]} : vector<8x128xi1> to vector<1x128xi1>
      %97 = vector.broadcast %96 : vector<1x128xi1> to vector<128x128xi1>
      %98 = arith.andi %27, %97 : vector<128x128xi1>
      %cst_44 = arith.constant 0.000000e+00 : f32
      %99 = vector.shape_cast %17 : vector<1x128xf32> to vector<1x128xf32>
      %100 = vector.broadcast %99 : vector<1x128xf32> to vector<128x128xf32>
      %101 = vector.broadcast %cst_44 : f32 to vector<128x128xf32>
      %102 = arith.select %98, %100, %101 : vector<128x128xi1>, vector<128x128xf32>
      %cst_45 = arith.constant dense<0xFF800000> : vector<128xf32>
      %103 = vector.multi_reduction <maximumf>, %102, %cst_45 [1] : vector<128x128xf32> to vector<128xf32>
      %104 = vector.shape_cast %103 : vector<128xf32> to vector<128x1xf32>
      %c0_46 = arith.constant 0 : index
      %c0_47 = arith.constant 0 : index
      %c4 = arith.constant 4 : index
      %105 = vector.load %arg4[%c0_46, %c0_47, %c4] : memref<1x128x8xf32, #tpu.memory_space<vmem>>, vector<1x128x1xf32>
      %106 = vector.shape_cast %105 : vector<1x128x1xf32> to vector<128x1xf32>
      %107 = arith.maximumf %106, %104 : vector<128x1xf32>
      %c0_48 = arith.constant 0 : index
      %c0_49 = arith.constant 0 : index
      %c4_50 = arith.constant 4 : index
      %108 = vector.load %arg4[%c0_48, %c0_49, %c4_50] : memref<1x128x8xf32, #tpu.memory_space<vmem>>, vector<1x128x1xf32>
      %109 = vector.shape_cast %108 : vector<1x128x1xf32> to vector<128x1xf32>
      %110 = vector.shape_cast %107 : vector<128x1xf32> to vector<1x128x1xf32>
      tpu.vector_store %arg4[%c0_48, %c0_49, %c4_50], %110 {strides = array<i32>} : memref<1x128x8xf32, #tpu.memory_space<vmem>>, vector<1x128x1xf32>,
      %111 = vector.extract_strided_slice %24 {offsets = [5, 0], sizes = [1, 128], strides = [1, 1]} : vector<8x128xi1> to vector<1x128xi1>
      %112 = vector.broadcast %111 : vector<1x128xi1> to vector<128x128xi1>
      %113 = arith.andi %27, %112 : vector<128x128xi1>
      %cst_51 = arith.constant 0.000000e+00 : f32
      %114 = vector.shape_cast %17 : vector<1x128xf32> to vector<1x128xf32>
      %115 = vector.broadcast %114 : vector<1x128xf32> to vector<128x128xf32>
      %116 = vector.broadcast %cst_51 : f32 to vector<128x128xf32>
      %117 = arith.select %113, %115, %116 : vector<128x128xi1>, vector<128x128xf32>
      %cst_52 = arith.constant dense<0xFF800000> : vector<128xf32>
      %118 = vector.multi_reduction <maximumf>, %117, %cst_52 [1] : vector<128x128xf32> to vector<128xf32>
      %119 = vector.shape_cast %118 : vector<128xf32> to vector<128x1xf32>
      %c0_53 = arith.constant 0 : index
      %c0_54 = arith.constant 0 : index
      %c5 = arith.constant 5 : index
      %120 = vector.load %arg4[%c0_53, %c0_54, %c5] : memref<1x128x8xf32, #tpu.memory_space<vmem>>, vector<1x128x1xf32>
      %121 = vector.shape_cast %120 : vector<1x128x1xf32> to vector<128x1xf32>
      %122 = arith.maximumf %121, %119 : vector<128x1xf32>
      %c0_55 = arith.constant 0 : index
      %c0_56 = arith.constant 0 : index
      %c5_57 = arith.constant 5 : index
      %123 = vector.load %arg4[%c0_55, %c0_56, %c5_57] : memref<1x128x8xf32, #tpu.memory_space<vmem>>, vector<1x128x1xf32>
      %124 = vector.shape_cast %123 : vector<1x128x1xf32> to vector<128x1xf32>
      %125 = vector.shape_cast %122 : vector<128x1xf32> to vector<1x128x1xf32>
      tpu.vector_store %arg4[%c0_55, %c0_56, %c5_57], %125 {strides = array<i32>} : memref<1x128x8xf32, #tpu.memory_space<vmem>>, vector<1x128x1xf32>,
      %126 = vector.extract_strided_slice %24 {offsets = [6, 0], sizes = [1, 128], strides = [1, 1]} : vector<8x128xi1> to vector<1x128xi1>
      %127 = vector.broadcast %126 : vector<1x128xi1> to vector<128x128xi1>
      %128 = arith.andi %27, %127 : vector<128x128xi1>
      %cst_58 = arith.constant 0.000000e+00 : f32
      %129 = vector.shape_cast %17 : vector<1x128xf32> to vector<1x128xf32>
      %130 = vector.broadcast %129 : vector<1x128xf32> to vector<128x128xf32>
      %131 = vector.broadcast %cst_58 : f32 to vector<128x128xf32>
      %132 = arith.select %128, %130, %131 : vector<128x128xi1>, vector<128x128xf32>
      %cst_59 = arith.constant dense<0xFF800000> : vector<128xf32>
      %133 = vector.multi_reduction <maximumf>, %132, %cst_59 [1] : vector<128x128xf32> to vector<128xf32>
      %134 = vector.shape_cast %133 : vector<128xf32> to vector<128x1xf32>
      %c0_60 = arith.constant 0 : index
      %c0_61 = arith.constant 0 : index
      %c6 = arith.constant 6 : index
      %135 = vector.load %arg4[%c0_60, %c0_61, %c6] : memref<1x128x8xf32, #tpu.memory_space<vmem>>, vector<1x128x1xf32>
      %136 = vector.shape_cast %135 : vector<1x128x1xf32> to vector<128x1xf32>
      %137 = arith.maximumf %136, %134 : vector<128x1xf32>
      %c0_62 = arith.constant 0 : index
      %c0_63 = arith.constant 0 : index
      %c6_64 = arith.constant 6 : index
      %138 = vector.load %arg4[%c0_62, %c0_63, %c6_64] : memref<1x128x8xf32, #tpu.memory_space<vmem>>, vector<1x128x1xf32>
      %139 = vector.shape_cast %138 : vector<1x128x1xf32> to vector<128x1xf32>
      %140 = vector.shape_cast %137 : vector<128x1xf32> to vector<1x128x1xf32>
      tpu.vector_store %arg4[%c0_62, %c0_63, %c6_64], %140 {strides = array<i32>} : memref<1x128x8xf32, #tpu.memory_space<vmem>>, vector<1x128x1xf32>,
      %141 = vector.extract_strided_slice %24 {offsets = [7, 0], sizes = [1, 128], strides = [1, 1]} : vector<8x128xi1> to vector<1x128xi1>
      %142 = vector.broadcast %141 : vector<1x128xi1> to vector<128x128xi1>
      %143 = arith.andi %27, %142 : vector<128x128xi1>
      %cst_65 = arith.constant 0.000000e+00 : f32
      %144 = vector.shape_cast %17 : vector<1x128xf32> to vector<1x128xf32>
      %145 = vector.broadcast %144 : vector<1x128xf32> to vector<128x128xf32>
      %146 = vector.broadcast %cst_65 : f32 to vector<128x128xf32>
      %147 = arith.select %143, %145, %146 : vector<128x128xi1>, vector<128x128xf32>
      %cst_66 = arith.constant dense<0xFF800000> : vector<128xf32>
      %148 = vector.multi_reduction <maximumf>, %147, %cst_66 [1] : vector<128x128xf32> to vector<128xf32>
      %149 = vector.shape_cast %148 : vector<128xf32> to vector<128x1xf32>
      %c0_67 = arith.constant 0 : index
      %c0_68 = arith.constant 0 : index
      %c7 = arith.constant 7 : index
      %150 = vector.load %arg4[%c0_67, %c0_68, %c7] : memref<1x128x8xf32, #tpu.memory_space<vmem>>, vector<1x128x1xf32>
      %151 = vector.shape_cast %150 : vector<1x128x1xf32> to vector<128x1xf32>
      %152 = arith.maximumf %151, %149 : vector<128x1xf32>
      %c0_69 = arith.constant 0 : index
      %c0_70 = arith.constant 0 : index
      %c7_71 = arith.constant 7 : index
      %153 = vector.load %arg4[%c0_69, %c0_70, %c7_71] : memref<1x128x8xf32, #tpu.memory_space<vmem>>, vector<1x128x1xf32>
      %154 = vector.shape_cast %153 : vector<1x128x1xf32> to vector<128x1xf32>
      %155 = vector.shape_cast %152 : vector<128x1xf32> to vector<1x128x1xf32>
      tpu.vector_store %arg4[%c0_69, %c0_70, %c7_71], %155 {strides = array<i32>} : memref<1x128x8xf32, #tpu.memory_space<vmem>>, vector<1x128x1xf32>,
    }
    %c2_i32_5 = arith.constant 2 : i32
    return
  }
  func.func @transform_0(%arg0: i32) -> (i32, i32) {
    %c0_i32 = arith.constant 0 : i32
    %c0_i32_0 = arith.constant 0 : i32
    %c0_i32_1 = arith.constant 0 : i32
    return %c0_i32, %c0_i32_0 : i32, i32
  }
  func.func @transform_1(%arg0: i32) -> (i32, i32) {
    %c0_i32 = arith.constant 0 : i32
    %c0_i32_0 = arith.constant 0 : i32
    %c0_i32_1 = arith.constant 0 : i32
    return %c0_i32, %c0_i32_0 : i32, i32
  }
  func.func @transform_2(%arg0: i32) -> (i32, i32) {
    %c0_i32 = arith.constant 0 : i32
    %c0_i32_0 = arith.constant 0 : i32
    return %arg0, %c0_i32 : i32, i32
  }
  func.func @transform_3(%arg0: i32) -> (i32, i32, i32) {
    %c0_i32 = arith.constant 0 : i32
    %c0_i32_0 = arith.constant 0 : i32
    %c0_i32_1 = arith.constant 0 : i32
    return %arg0, %c0_i32, %c0_i32_0 : i32, i32, i32
  }
}

</mosaic_0001>

<llo_original>
// kernel: tpu_custom_call.1
$region0: #{tpu_custom_call.1}
  #allocation0 [shape = 'u32[]', space=smem, size = 0x4, offset = 0x4, fixed_abs, tag = 'smem constant byte address 0x4 - core index']
  #allocation1 [shape = 'u32[144,128]{1,0:T(1,128)}', space=vmem, size = 0x12000, scoped, tag = 'internal scratch']
  %s0 = inlined_call_operand.hbm [shape: s32[2,128], index: 0, kind: input, shape index: {}]
  %s1 = inlined_call_operand.hbm [shape: f32[2,128], index: 1, kind: input, shape index: {}]
  %s2 = inlined_call_operand.hbm [shape: f32[16,128], index: 2, kind: output, shape index: {0}]
  %s3 = inlined_call_operand.hbm [shape: f32[2,128,8], index: 3, kind: output, shape index: {1}]
  %4 = xla_tuple %s2, %s3
  %s5 = sld [smem:[#allocation0]]
  $region64: #{tpu_custom_call.1} parent=0
    _
  %s7 = ssub.s32 1, %s5
  %s8 = scalar_select 0, %s7, %s5
  $region1: #{tpu_custom_call.1} parent=0
    #allocation2 [shape = 'u8[1024]{0}', space=vmem, size = 0x400, scoped, tag = 'input window, operand 0, single buffered']
    #allocation3 [shape = 's32[2]{0}', space=sflag, size = 0x8, scoped, tag = 'scoped memory for tpu_custom_call.1']
    #allocation4 [shape = 's32[2]{0}', space=sflag, size = 0x8, scoped, tag = 'scoped memory for tpu_custom_call.1']
    #allocation5 [shape = 'u8[1024]{0}', space=vmem, size = 0x400, scoped, tag = 'input window, operand 1, single buffered']
    #allocation6 [shape = 's32[1]{0}', space=sflag, size = 0x4, scoped, tag = 'scoped memory for tpu_custom_call.1']
    #allocation7 [shape = 'u8[8192]{0}', space=vmem, size = 0x2000, scoped, tag = 'output window, operand 0']
    #allocation8 [shape = 'u8[131072]{0}', space=vmem, size = 0x20000, scoped, tag = 'output window, operand 1']
    #allocation9 [shape = 's32[2]{0}', space=sflag, size = 0x8, scoped, tag = 'scoped memory for tpu_custom_call.1']
    %9 = vsyncpa [#allocation3], 0
    %10 = vsyncpa [#allocation6], 0
    %11 = vsyncpa [#allocation4], 0
    %s12 = scalar_lea.sflag [#allocation4], 1
    %13 = vsyncpa %s12, 0
    %14 = vsyncpa [#allocation9], 0
    %s15 = scalar_lea.sflag [#allocation9], 1
    %16 = vsyncpa %s15, 0
    loop: start=0, step=1, limit=4
    $region2: #{tpu_custom_call.1} parent=1 // loop_pre_header
      _
    $region3: #{tpu_custom_call.1} parent=1 // loop_header
      %s18 = sphi 0, %s22
      %p19 = scmp.ge.s32.totalorder %s18, 4
      %s26 = sphi 0, %s26
      %s28 = sphi 0, %s26
      %s29 = sphi 0, %s28
      %s43 = sphi 0, %s29
      %s47 = sphi 0, %s47
      %s49 = sphi 0, %s47
      %s50 = sphi 0, %s49
      %s64 = sphi 0, %s50
      %s70 = sphi 0, %s72
      %s73 = sphi 0, %s70
      %s74 = sphi 0, %s73
      %s90 = sphi 0, %s74
      %s96 = sphi 0, %s98
      %s99 = sphi 0, %s96
      %s100 = sphi 0, %s99
      %s116 = sphi 0, %s100
    $region4: #{tpu_custom_call.1} parent=1 // loop_header_branch
      %21 = sbr.rel (%p19) target = $region8
    $region5: #{tpu_custom_call.1} parent=1 // loop_body
      %s23 = ssub.s32 %s18, 1
      %s24 = ssub.s32 %s18, 2
      %s25 = sadd.s32 %s18, 1
      %s27 = sadd.s32 %s26, 1
      %p30 = scmp.eq.s32.totalorder %s18, 1
      %p31 = scmp.ne.s32.totalorder %s26, %s28
      %p32 = scmp.eq.s32.totalorder %s18, 0
      %p33 = por %p31, %p32
      %p34 = scmp.ne.s32.totalorder %s26, %s28
      %p35 = scmp.eq.s32.totalorder %s23, 1
      %p36 = por %p34, %p35
      %p37 = scmp.ne.s32.totalorder %s28, %s29
      %p38 = scmp.eq.s32.totalorder %s23, 0
      %p39 = por %p37, %p38
      %p40 = scmp.ne.s32.totalorder %s28, %s29
      %p41 = scmp.eq.s32.totalorder %s24, 1
      %p42 = por %p40, %p41
      %p44 = scmp.ne.s32.totalorder %s29, %s43
      %p45 = scmp.eq.s32.totalorder %s24, 0
      %p46 = por %p44, %p45
      %s48 = sadd.s32 %s47, 1
      %p51 = scmp.eq.s32.totalorder %s18, 1
      %p52 = scmp.ne.s32.totalorder %s47, %s49
      %p53 = scmp.eq.s32.totalorder %s18, 0
      %p54 = por %p52, %p53
      %p55 = scmp.ne.s32.totalorder %s47, %s49
      %p56 = scmp.eq.s32.totalorder %s23, 1
      %p57 = por %p55, %p56
      %p58 = scmp.ne.s32.totalorder %s49, %s50
      %p59 = scmp.eq.s32.totalorder %s23, 0
      %p60 = por %p58, %p59
      %p61 = scmp.ne.s32.totalorder %s49, %s50
      %p62 = scmp.eq.s32.totalorder %s24, 1
      %p63 = por %p61, %p62
      %p65 = scmp.ne.s32.totalorder %s50, %s64
      %p66 = scmp.eq.s32.totalorder %s24, 0
      %p67 = por %p65, %p66
      %s68 = ssub.s32 %s18, %s25
      %p69 = scmp.eq.s32.totalorder %s68, 0
      %s71 = sadd.s32 %s70, 1
      %s72 = scalar_select %p69, %s70, %s71
      %p75 = pneg %p69
      %p76 = scmp.eq.s32.totalorder %s18, 1
      %p77 = por %p75, %p76
      %p78 = scmp.ne.s32.totalorder %s70, %s73
      %p79 = scmp.eq.s32.totalorder %s18, 0
      %p80 = por %p78, %p79
      %p81 = scmp.ne.s32.totalorder %s70, %s73
      %p82 = scmp.eq.s32.totalorder %s23, 1
      %p83 = por %p81, %p82
      %p84 = scmp.ne.s32.totalorder %s73, %s74
      %p85 = scmp.eq.s32.totalorder %s23, 0
      %p86 = por %p84, %p85
      %p87 = scmp.ne.s32.totalorder %s73, %s74
      %p88 = scmp.eq.s32.totalorder %s24, 1
      %p89 = por %p87, %p88
      %p91 = scmp.ne.s32.totalorder %s74, %s90
      %p92 = scmp.eq.s32.totalorder %s24, 0
      %p93 = por %p91, %p92
      %s94 = ssub.s32 %s18, %s25
      %p95 = scmp.eq.s32.totalorder %s94, 0
      %s97 = sadd.s32 %s96, 1
      %s98 = scalar_select %p95, %s96, %s97
      %p101 = pneg %p95
      %p102 = scmp.eq.s32.totalorder %s18, 1
      %p103 = por %p101, %p102
      %p104 = scmp.ne.s32.totalorder %s96, %s99
      %p105 = scmp.eq.s32.totalorder %s18, 0
      %p106 = por %p104, %p105
      %p107 = scmp.ne.s32.totalorder %s96, %s99
      %p108 = scmp.eq.s32.totalorder %s23, 1
      %p109 = por %p107, %p108
      %p110 = scmp.ne.s32.totalorder %s99, %s100
      %p111 = scmp.eq.s32.totalorder %s23, 0
      %p112 = por %p110, %p111
      %p113 = scmp.ne.s32.totalorder %s99, %s100
      %p114 = scmp.eq.s32.totalorder %s24, 1
      %p115 = por %p113, %p114
      %p117 = scmp.ne.s32.totalorder %s100, %s116
      %p118 = scmp.eq.s32.totalorder %s24, 0
      %p119 = por %p117, %p118
      %p120 = scmp.le.s32.totalorder 1, %s18
      %p121 = scmp.lt.s32.totalorder %s18, 3
      %p122 = pnand %p120, %p121
      %p123 = pneg %p122
      // Predicated region
      $region9: #{tpu_custom_call.1} parent=5 // pred_check
        _
      $region10: #{tpu_custom_call.1} parent=5 // pred_check_branch
        %125 = sbr.rel (%p122) target = $region12
      $region11: #{tpu_custom_call.1} parent=5 // pred_region
        %s126 = ssub.s32 %s18, 1
        // Predicated region
        $region13: #{tpu_custom_call.1} parent=11 // pred_check
          %p127 = pneg %p39
        $region14: #{tpu_custom_call.1} parent=11 // pred_check_branch
          %129 = sbr.rel (%p127) target = $region16
        $region15: #{tpu_custom_call.1} parent=11 // pred_region
          %s131 = ssub.s32 32, 32
          %132 = vsyncadd [#allocation3], %s131
          %s134 = sshll.u32 [#allocation2], 4
          %s135 = int_to_ptr.vmem [resolvable:$true] %s134
          %137 = dma.hbm_to_vmem [thread:$0]  %s0, 32, %s135, [#allocation3]
        $region16: #{tpu_custom_call.1} parent=11 // pred_fallthru
          _
        // Predicated region
        $region17: #{tpu_custom_call.1} parent=11 // pred_check
          %p138 = pneg %p60
        $region18: #{tpu_custom_call.1} parent=11 // pred_check_branch
          %140 = sbr.rel (%p138) target = $region20
        $region19: #{tpu_custom_call.1} parent=11 // pred_region
          %s142 = ssub.s32 32, 32
          %143 = vsyncadd [#allocation6], %s142
          %s145 = sshll.u32 [#allocation5], 4
          %s146 = int_to_ptr.vmem [resolvable:$true] %s145
          %148 = dma.hbm_to_vmem [thread:$0]  %s1, 32, %s146, [#allocation6]
        $region20: #{tpu_custom_call.1} parent=11 // pred_fallthru
          _
      $region12: #{tpu_custom_call.1} parent=5 // pred_fallthru
        _
      %p149 = scmp.lt.s32.totalorder %s18, 2
      // Predicated region
      $region21: #{tpu_custom_call.1} parent=5 // pred_check
        %p150 = pneg %p149
      $region22: #{tpu_custom_call.1} parent=5 // pred_check_branch
        %152 = sbr.rel (%p150) target = $region24
      $region23: #{tpu_custom_call.1} parent=5 // pred_region
        _
      $region24: #{tpu_custom_call.1} parent=5 // pred_fallthru
        _
      %p153 = scmp.le.s32.totalorder 1, %s18
      %p154 = scmp.lt.s32.totalorder %s18, 3
      %p155 = pnand %p153, %p154
      %p156 = pneg %p155
      // Predicated region
      $region25: #{tpu_custom_call.1} parent=5 // pred_check
        _
      $region26: #{tpu_custom_call.1} parent=5 // pred_check_branch
        %158 = sbr.rel (%p155) target = $region28
      $region27: #{tpu_custom_call.1} parent=5 // pred_region
        %s159 = ssub.s32 %s18, 1
        // Predicated region
        $region29: #{tpu_custom_call.1} parent=27 // pred_check
          %p160 = pneg %p39
        $region30: #{tpu_custom_call.1} parent=27 // pred_check_branch
          %162 = sbr.rel (%p160) target = $region32
        $region31: #{tpu_custom_call.1} parent=27 // pred_region
          %163 = dma.done [#allocation3], 32
        $region32: #{tpu_custom_call.1} parent=27 // pred_fallthru
          _
        // Predicated region
        $region33: #{tpu_custom_call.1} parent=27 // pred_check
          %p164 = pneg %p60
        $region34: #{tpu_custom_call.1} parent=27 // pred_check_branch
          %166 = sbr.rel (%p164) target = $region36
        $region35: #{tpu_custom_call.1} parent=27 // pred_region
          %167 = dma.done [#allocation6], 32
        $region36: #{tpu_custom_call.1} parent=27 // pred_fallthru
          _
        %p168 = pneg %p39
        %p169 = pneg %p36
        %p170 = pneg %p60
        %p171 = pneg %p57
        %p172 = pneg %p86
        %p173 = pneg %p83
        %s174 = sand.u32 %s73, 1
        %s175 = scalar_lea.sflag [#allocation4], %s174
        %s176 = sand.u32 %s73, 1
        %s177 = smul.addr %s176, 8
        %s178 = scalar_lea.vmem [#allocation7], %s177
        %p179 = pneg %p112
        %p180 = pneg %p109
        %s181 = sand.u32 %s99, 1
        %s182 = scalar_lea.sflag [#allocation9], %s181
        %s183 = sand.u32 %s99, 1
        %s184 = smul.addr %s183, 128
        %s185 = scalar_lea.vmem [#allocation8], %s184
        %s186 = smul.u32 %s23, 8
        %187 = vst [vmem:[%s178] sm:$0xff] 0.0
        %vm188 = vcmask 64512
        %189 = vst.msk [vmem:[%s185] sm:$0xff] %vm188, 0.0
        %190 = vst.msk [vmem:[%s185 + $0x8] sm:$0xff] %vm188, 0.0
        %191 = vst.msk [vmem:[%s185 + $0x10] sm:$0xff] %vm188, 0.0
        %192 = vst.msk [vmem:[%s185 + $0x18] sm:$0xff] %vm188, 0.0
        %193 = vst.msk [vmem:[%s185 + $0x20] sm:$0xff] %vm188, 0.0
        %194 = vst.msk [vmem:[%s185 + $0x28] sm:$0xff] %vm188, 0.0
        %195 = vst.msk [vmem:[%s185 + $0x30] sm:$0xff] %vm188, 0.0
        %196 = vst.msk [vmem:[%s185 + $0x38] sm:$0xff] %vm188, 0.0
        %197 = vst.msk [vmem:[%s185 + $0x40] sm:$0xff] %vm188, 0.0
        %198 = vst.msk [vmem:[%s185 + $0x48] sm:$0xff] %vm188, 0.0
        %199 = vst.msk [vmem:[%s185 + $0x50] sm:$0xff] %vm188, 0.0
        %200 = vst.msk [vmem:[%s185 + $0x58] sm:$0xff] %vm188, 0.0
        %201 = vst.msk [vmem:[%s185 + $0x60] sm:$0xff] %vm188, 0.0
        %202 = vst.msk [vmem:[%s185 + $0x68] sm:$0xff] %vm188, 0.0
        %203 = vst.msk [vmem:[%s185 + $0x70] sm:$0xff] %vm188, 0.0
        %204 = vst.msk [vmem:[%s185 + $0x78] sm:$0xff] %vm188, 0.0
        %v205 = vlaneseq
        %v206 = vshrl.u32 %v205, 7
        %v207 = vstv %s186
        %v208 = vadd.s32 %v207, %v206
        %v209 = vadd.s32 %v206, 8
        %v210 = vadd.s32 %v206, 16
        %v211 = vadd.s32 %v206, 24
        %v212 = vadd.s32 %v206, 32
        %v213 = vadd.s32 %v206, 40
        %v214 = vadd.s32 %v206, 48
        %v215 = vadd.s32 %v206, 56
        %v216 = vadd.s32 %v206, 64
        %v217 = vadd.s32 %v206, 72
        %v218 = vadd.s32 %v206, 80
        %v219 = vadd.s32 %v206, 88
        %v220 = vadd.s32 %v206, 96
        %v221 = vadd.s32 %v206, 104
        %v222 = vadd.s32 %v206, 112
        %v223 = vadd.s32 %v206, 120
        loop: start=0, step=1, limit=2
        $region37: #{tpu_custom_call.1} parent=27 // loop_pre_header
          _
        $region38: #{tpu_custom_call.1} parent=27 // loop_header
          %s225 = sphi 0, %s229
          %p226 = scmp.ge.s32.totalorder %s225, 2
        $region39: #{tpu_custom_call.1} parent=27 // loop_header_branch
          %228 = sbr.rel (%p226) target = $region43
        $region40: #{tpu_custom_call.1} parent=27 // loop_body
          %s230 = scalar_lea.vmem [#allocation2], %s225
          %v231 = vld [vmem:[%s230] sm:$0x1]
          %s232 = scalar_lea.vmem [#allocation5], %s225
          %v233 = vld [vmem:[%s232] sm:$0x1]
          %v234 = vshra.s32 %v231, 7
          %v235 = vand.u32 %v231, 127
          %v236 = vlaneseq
          %v237 = vshrl.u32 %v236, 7
          %v238 = vsub.s32 0, %v237
          %v239 = vrot.slane %v234, %v238
          %vm240 = vcmp.eq.s32.totalorder %v239, %v208
          %v241 = vlaneseq
          %v242 = vshrl.u32 %v241, 7
          %v243 = vsub.s32 0, %v242
          %v244 = vrot.slane %v235, %v243
          %vm245 = vcmp.eq.s32.totalorder %v244, %v206
          %vm246 = vcmp.eq.s32.totalorder %v244, %v209
          %vm247 = vcmp.eq.s32.totalorder %v244, %v210
          %vm248 = vcmp.eq.s32.totalorder %v244, %v211
          %vm249 = vcmp.eq.s32.totalorder %v244, %v212
          %vm250 = vcmp.eq.s32.totalorder %v244, %v213
          %vm251 = vcmp.eq.s32.totalorder %v244, %v214
          %vm252 = vcmp.eq.s32.totalorder %v244, %v215
          %vm253 = vcmp.eq.s32.totalorder %v244, %v216
          %vm254 = vcmp.eq.s32.totalorder %v244, %v217
          %vm255 = vcmp.eq.s32.totalorder %v244, %v218
          %vm256 = vcmp.eq.s32.totalorder %v244, %v219
          %vm257 = vcmp.eq.s32.totalorder %v244, %v220
          %vm258 = vcmp.eq.s32.totalorder %v244, %v221
          %vm259 = vcmp.eq.s32.totalorder %v244, %v222
          %vm260 = vcmp.eq.s32.totalorder %v244, %v223
          %v261 = vld [vmem:[%s178] sm:$0xff]
          %v262 = vsel %vm240, 1, 0
          %v263 = vcvt.s32.f32 %v262
          %v264 = vsel %vm245, 1, 0
          %v265 = vsel %vm246, 1, 0
          %v266 = vsel %vm247, 1, 0
          %v267 = vsel %vm248, 1, 0
          %v268 = vsel %vm249, 1, 0
          %v269 = vsel %vm250, 1, 0
          %v270 = vsel %vm251, 1, 0
          %v271 = vsel %vm252, 1, 0
          %v272 = vsel %vm253, 1, 0
          %v273 = vsel %vm254, 1, 0
          %v274 = vsel %vm255, 1, 0
          %v275 = vsel %vm256, 1, 0
          %v276 = vsel %vm257, 1, 0
          %v277 = vsel %vm258, 1, 0
          %v278 = vsel %vm259, 1, 0
          %v279 = vsel %vm260, 1, 0
          %v280 = vcvt.s32.f32 %v264
          %v281 = vcvt.s32.f32 %v265
          %v282 = vcvt.s32.f32 %v266
          %v283 = vcvt.s32.f32 %v267
          %v284 = vcvt.s32.f32 %v268
          %v285 = vcvt.s32.f32 %v269
          %v286 = vcvt.s32.f32 %v270
          %v287 = vcvt.s32.f32 %v271
          %v288 = vcvt.s32.f32 %v272
          %v289 = vcvt.s32.f32 %v273
          %v290 = vcvt.s32.f32 %v274
          %v291 = vcvt.s32.f32 %v275
          %v292 = vcvt.s32.f32 %v276
          %v293 = vcvt.s32.f32 %v277
          %v294 = vcvt.s32.f32 %v278
          %v295 = vcvt.s32.f32 %v279
          %296 = vmatprep.subr.mxu0 0.0
          %297 = vmatpush1.xpose.msra.mxu0 %v280
          %298 = vmatprep.subr.mxu0 0.0
          %299 = vmatpush1.xpose.msra.mxu0 %v281
          %300 = vmatprep.subr.mxu0 0.0
          %301 = vmatpush1.xpose.msra.mxu0 %v282
          %302 = vmatprep.subr.mxu0 0.0
          %303 = vmatpush1.xpose.msra.mxu0 %v283
          %304 = vmatprep.subr.mxu0 0.0
          %305 = vmatpush1.xpose.msra.mxu0 %v284
          %306 = vmatprep.subr.mxu0 0.0
          %307 = vmatpush1.xpose.msra.mxu0 %v285
          %308 = vmatprep.subr.mxu0 0.0
          %309 = vmatpush1.xpose.msra.mxu0 %v286
          %310 = vmatprep.subr.mxu0 0.0
          %311 = vmatpush1.xpose.msra.mxu0 %v287
          %312 = vmatprep.subr.mxu0 0.0
          %313 = vmatpush1.xpose.msra.mxu0 %v288
          %314 = vmatprep.subr.mxu0 0.0
          %315 = vmatpush1.xpose.msra.mxu0 %v289
          %316 = vmatprep.subr.mxu0 0.0
          %317 = vmatpush1.xpose.msra.mxu0 %v290
          %318 = vmatprep.subr.mxu0 0.0
          %319 = vmatpush1.xpose.msra.mxu0 %v291
          %320 = vmatprep.subr.mxu0 0.0
          %321 = vmatpush1.xpose.msra.mxu0 %v292
          %322 = vmatprep.subr.mxu0 0.0
          %323 = vmatpush1.xpose.msra.mxu0 %v293
          %324 = vmatprep.subr.mxu0 0.0
          %325 = vmatpush1.xpose.msra.mxu0 %v294
          %326 = vmatprep.subr.mxu0 0.0
          %327 = vmatpush1.xpose.msra.mxu0 %v295
          %328 = vmatprep.subr.mxu0 0.0
          %329 = vmatpush1.xpose.msra.mxu0 0.0
          %330 = vmatprep.subr.mxu0 0.0
          %331 = vmatpush1.xpose.msra.mxu0 0.0
          %332 = vmatprep.subr.mxu0 0.0
          %333 = vmatpush1.xpose.msra.mxu0 0.0
          %334 = vmatprep.subr.mxu0 0.0
          %335 = vmatpush1.xpose.msra.mxu0 0.0
          %336 = vmatprep.subr.mxu0 0.0
          %337 = vmatpush1.xpose.msra.mxu0 0.0
          %338 = vmatprep.subr.mxu0 0.0
          %339 = vmatpush1.xpose.msra.mxu0 0.0
          %340 = vmatprep.subr.mxu0 0.0
          %341 = vmatpush1.xpose.msra.mxu0 0.0
          %342 = vmatprep.subr.mxu0 0.0
          %343 = vmatpush1.xpose.msra.mxu0 0.0
          %344 = vmatprep.subr.mxu0 0.0
          %345 = vmatpush1.xpose.msra.mxu0 0.0
          %346 = vmatprep.subr.mxu0 0.0
          %347 = vmatpush1.xpose.msra.mxu0 0.0
          %348 = vmatprep.subr.mxu0 0.0
          %349 = vmatpush1.xpose.msra.mxu0 0.0
          %350 = vmatprep.subr.mxu0 0.0
          %351 = vmatpush1.xpose.msra.mxu0 0.0
          %352 = vmatprep.subr.mxu0 0.0
          %353 = vmatpush1.xpose.msra.mxu0 0.0
          %354 = vmatprep.subr.mxu0 0.0
          %355 = vmatpush1.xpose.msra.mxu0 0.0
          %356 = vmatprep.subr.mxu0 0.0
          %357 = vmatpush1.xpose.msra.mxu0 0.0
          %358 = vmatprep.subr.mxu0 0.0
          %359 = vmatpush1.xpose.msra.mxu0 0.0
          %360 = vmatprep.mubr.f32.mxu0 0.0
          %361 = vmatmul.mubr.f32.gmra.mrb[0].mxu0 %v263
          %v362 = vpop.f32.mrb[0].mxu0
          %v363 = vadd.f32 0.0, %v362
          %v364 = vpop.f32.mrb[0].mxu0
          %365 = vdwg.mxu0
          %v366 = vadd.f32 %v261, %v363
          %367 = vst [vmem:[%s178] sm:$0xff] %v366
          %vm368 = vcmp.eq.s32.totalorder %v262, 1
          %v369 = vsel %vm368, 1, 0
          %v370 = vrot.slane %v369, 7
          %vm371 = vcmask 1041409
          %v372 = vsel %vm371, %v370, %v369
          %v373 = vrot.slane %v369, 6
          %vm374 = vcmask 1042434
          %v375 = vsel %vm374, %v373, %v372
          %v376 = vrot.slane %v369, 5
          %vm377 = vcmask 1043459
          %v378 = vsel %vm377, %v376, %v375
          %v379 = vrot.slane %v369, 4
          %vm380 = vcmask 1044484
          %v381 = vsel %vm380, %v379, %v378
          %v382 = vrot.slane %v369, 3
          %vm383 = vcmask 1045509
          %v384 = vsel %vm383, %v382, %v381
          %v385 = vrot.slane %v369, 2
          %vm386 = vcmask 1046534
          %v387 = vsel %vm386, %v385, %v384
          %v388 = vrot.slane %v369, 1
          %vm389 = vcmask 1047559
          %v390 = vsel %vm389, %v388, %v387
          %vm391 = vcmp.ne.s32.totalorder %v390, 0
          %vm392 = vmand %vm245, %vm391
          %vm393 = vmand %vm246, %vm391
          %vm394 = vmand %vm247, %vm391
          %vm395 = vmand %vm248, %vm391
          %vm396 = vmand %vm249, %vm391
          %vm397 = vmand %vm250, %vm391
          %vm398 = vmand %vm251, %vm391
          %vm399 = vmand %vm252, %vm391
          %vm400 = vmand %vm253, %vm391
          %vm401 = vmand %vm254, %vm391
          %vm402 = vmand %vm255, %vm391
          %vm403 = vmand %vm256, %vm391
          %vm404 = vmand %vm257, %vm391
          %vm405 = vmand %vm258, %vm391
          %vm406 = vmand %vm259, %vm391
          %vm407 = vmand %vm260, %vm391
          %v408 = vlaneseq
          %v409 = vshrl.u32 %v408, 7
          %v410 = vsub.s32 0, %v409
          %v411 = vrot.slane %v233, %v410
          %v412 = vsel %vm392, %v411, 0.0
          %v413 = vsel %vm393, %v411, 0.0
          %v414 = vsel %vm394, %v411, 0.0
          %v415 = vsel %vm395, %v411, 0.0
          %v416 = vsel %vm396, %v411, 0.0
          %v417 = vsel %vm397, %v411, 0.0
          %v418 = vsel %vm398, %v411, 0.0
          %v419 = vsel %vm399, %v411, 0.0
          %v420 = vsel %vm400, %v411, 0.0
          %v421 = vsel %vm401, %v411, 0.0
          %v422 = vsel %vm402, %v411, 0.0
          %v423 = vsel %vm403, %v411, 0.0
          %v424 = vsel %vm404, %v411, 0.0
          %v425 = vsel %vm405, %v411, 0.0
          %v426 = vsel %vm406, %v411, 0.0
          %v427 = vsel %vm407, %v411, 0.0
          %428 = vmax.xlane.f32.xlu0 %v412
          %v429 = vpop.xlane.xlu0 %428
          %430 = vmax.xlane.f32.xlu0 %v413
          %v431 = vpop.xlane.xlu0 %430
          %432 = vmax.xlane.f32.xlu0 %v414
          %v433 = vpop.xlane.xlu0 %432
          %434 = vmax.xlane.f32.xlu0 %v415
          %v435 = vpop.xlane.xlu0 %434
          %436 = vmax.xlane.f32.xlu0 %v416
          %v437 = vpop.xlane.xlu0 %436
          %438 = vmax.xlane.f32.xlu0 %v417
          %v439 = vpop.xlane.xlu0 %438
          %440 = vmax.xlane.f32.xlu0 %v418
          %v441 = vpop.xlane.xlu0 %440
          %442 = vmax.xlane.f32.xlu0 %v419
          %v443 = vpop.xlane.xlu0 %442
          %444 = vmax.xlane.f32.xlu0 %v420
          %v445 = vpop.xlane.xlu0 %444
          %446 = vmax.xlane.f32.xlu0 %v421
          %v447 = vpop.xlane.xlu0 %446
          %448 = vmax.xlane.f32.xlu0 %v422
          %v449 = vpop.xlane.xlu0 %448
          %450 = vmax.xlane.f32.xlu0 %v423
          %v451 = vpop.xlane.xlu0 %450
          %452 = vmax.xlane.f32.xlu0 %v424
          %v453 = vpop.xlane.xlu0 %452
          %454 = vmax.xlane.f32.xlu0 %v425
          %v455 = vpop.xlane.xlu0 %454
          %456 = vmax.xlane.f32.xlu0 %v426
          %v457 = vpop.xlane.xlu0 %456
          %458 = vmax.xlane.f32.xlu0 %v427
          %v459 = vpop.xlane.xlu0 %458
          %v460 = vld [vmem:[%s185] sm:$0xff]
          %v461 = vld [vmem:[%s185 + $0x8] sm:$0xff]
          %v462 = vld [vmem:[%s185 + $0x10] sm:$0xff]
          %v463 = vld [vmem:[%s185 + $0x18] sm:$0xff]
          %v464 = vld [vmem:[%s185 + $0x20] sm:$0xff]
          %v465 = vld [vmem:[%s185 + $0x28] sm:$0xff]
          %v466 = vld [vmem:[%s185 + $0x30] sm:$0xff]
          %v467 = vld [vmem:[%s185 + $0x38] sm:$0xff]
          %v468 = vld [vmem:[%s185 + $0x40] sm:$0xff]
          %v469 = vld [vmem:[%s185 + $0x48] sm:$0xff]
          %v470 = vld [vmem:[%s185 + $0x50] sm:$0xff]
          %v471 = vld [vmem:[%s185 + $0x58] sm:$0xff]
          %v472 = vld [vmem:[%s185 + $0x60] sm:$0xff]
          %v473 = vld [vmem:[%s185 + $0x68] sm:$0xff]
          %v474 = vld [vmem:[%s185 + $0x70] sm:$0xff]
          %v475 = vld [vmem:[%s185 + $0x78] sm:$0xff]
          %v476 = vmax.f32 %v460, %v429
          %v477 = vmax.f32 %v461, %v431
          %v478 = vmax.f32 %v462, %v433
          %v479 = vmax.f32 %v463, %v435
          %v480 = vmax.f32 %v464, %v437
          %v481 = vmax.f32 %v465, %v439
          %v482 = vmax.f32 %v466, %v441
          %v483 = vmax.f32 %v467, %v443
          %v484 = vmax.f32 %v468, %v445
          %v485 = vmax.f32 %v469, %v447
          %v486 = vmax.f32 %v470, %v449
          %v487 = vmax.f32 %v471, %v451
          %v488 = vmax.f32 %v472, %v453
          %v489 = vmax.f32 %v473, %v455
          %v490 = vmax.f32 %v474, %v457
          %v491 = vmax.f32 %v475, %v459
          %vm492 = vcmask 7168
          %493 = vst.msk [vmem:[%s185] sm:$0xff] %vm492, %v476
          %494 = vst.msk [vmem:[%s185 + $0x8] sm:$0xff] %vm492, %v477
          %495 = vst.msk [vmem:[%s185 + $0x10] sm:$0xff] %vm492, %v478
          %496 = vst.msk [vmem:[%s185 + $0x18] sm:$0xff] %vm492, %v479
          %497 = vst.msk [vmem:[%s185 + $0x20] sm:$0xff] %vm492, %v480
          %498 = vst.msk [vmem:[%s185 + $0x28] sm:$0xff] %vm492, %v481
          %499 = vst.msk [vmem:[%s185 + $0x30] sm:$0xff] %vm492, %v482
          %500 = vst.msk [vmem:[%s185 + $0x38] sm:$0xff] %vm492, %v483
          %501 = vst.msk [vmem:[%s185 + $0x40] sm:$0xff] %vm492, %v484
          %502 = vst.msk [vmem:[%s185 + $0x48] sm:$0xff] %vm492, %v485
          %503 = vst.msk [vmem:[%s185 + $0x50] sm:$0xff] %vm492, %v486
          %504 = vst.msk [vmem:[%s185 + $0x58] sm:$0xff] %vm492, %v487
          %505 = vst.msk [vmem:[%s185 + $0x60] sm:$0xff] %vm492, %v488
          %506 = vst.msk [vmem:[%s185 + $0x68] sm:$0xff] %vm492, %v489
          %507 = vst.msk [vmem:[%s185 + $0x70] sm:$0xff] %vm492, %v490
          %508 = vst.msk [vmem:[%s185 + $0x78] sm:$0xff] %vm492, %v491
          %v509 = vsel %vm371, %v369, %v388
          %v510 = vsel %vm374, %v370, %v509
          %v511 = vsel %vm377, %v373, %v510
          %v512 = vsel %vm380, %v376, %v511
          %v513 = vsel %vm383, %v379, %v512
          %v514 = vsel %vm386, %v382, %v513
          %v515 = vsel %vm389, %v385, %v514
          %vm516 = vcmp.ne.s32.totalorder %v515, 0
          %vm517 = vmand %vm245, %vm516
          %vm518 = vmand %vm246, %vm516
          %vm519 = vmand %vm247, %vm516
          %vm520 = vmand %vm248, %vm516
          %vm521 = vmand %vm249, %vm516
          %vm522 = vmand %vm250, %vm516
          %vm523 = vmand %vm251, %vm516
          %vm524 = vmand %vm252, %vm516
          %vm525 = vmand %vm253, %vm516
          %vm526 = vmand %vm254, %vm516
          %vm527 = vmand %vm255, %vm516
          %vm528 = vmand %vm256, %vm516
          %vm529 = vmand %vm257, %vm516
          %vm530 = vmand %vm258, %vm516
          %vm531 = vmand %vm259, %vm516
          %vm532 = vmand %vm260, %vm516
          %v533 = vsel %vm517, %v411, 0.0
          %v534 = vsel %vm518, %v411, 0.0
          %v535 = vsel %vm519, %v411, 0.0
          %v536 = vsel %vm520, %v411, 0.0
          %v537 = vsel %vm521, %v411, 0.0
          %v538 = vsel %vm522, %v411, 0.0
          %v539 = vsel %vm523, %v411, 0.0
          %v540 = vsel %vm524, %v411, 0.0
          %v541 = vsel %vm525, %v411, 0.0
          %v542 = vsel %vm526, %v411, 0.0
          %v543 = vsel %vm527, %v411, 0.0
          %v544 = vsel %vm528, %v411, 0.0
          %v545 = vsel %vm529, %v411, 0.0
          %v546 = vsel %vm530, %v411, 0.0
          %v547 = vsel %vm531, %v411, 0.0
          %v548 = vsel %vm532, %v411, 0.0
          %549 = vmax.xlane.f32.xlu0 %v533
          %v550 = vpop.xlane.xlu0 %549
          %551 = vmax.xlane.f32.xlu0 %v534
          %v552 = vpop.xlane.xlu0 %551
          %553 = vmax.xlane.f32.xlu0 %v535
          %v554 = vpop.xlane.xlu0 %553
          %555 = vmax.xlane.f32.xlu0 %v536
          %v556 = vpop.xlane.xlu0 %555
          %557 = vmax.xlane.f32.xlu0 %v537
          %v558 = vpop.xlane.xlu0 %557
          %559 = vmax.xlane.f32.xlu0 %v538
          %v560 = vpop.xlane.xlu0 %559
          %561 = vmax.xlane.f32.xlu0 %v539
          %v562 = vpop.xlane.xlu0 %561
          %563 = vmax.xlane.f32.xlu0 %v540
          %v564 = vpop.xlane.xlu0 %563
          %565 = vmax.xlane.f32.xlu0 %v541
          %v566 = vpop.xlane.xlu0 %565
          %567 = vmax.xlane.f32.xlu0 %v542
          %v568 = vpop.xlane.xlu0 %567
          %569 = vmax.xlane.f32.xlu0 %v543
          %v570 = vpop.xlane.xlu0 %569
          %571 = vmax.xlane.f32.xlu0 %v544
          %v572 = vpop.xlane.xlu0 %571
          %573 = vmax.xlane.f32.xlu0 %v545
          %v574 = vpop.xlane.xlu0 %573
          %575 = vmax.xlane.f32.xlu0 %v546
          %v576 = vpop.xlane.xlu0 %575
          %577 = vmax.xlane.f32.xlu0 %v547
          %v578 = vpop.xlane.xlu0 %577
          %579 = vmax.xlane.f32.xlu0 %v548
          %v580 = vpop.xlane.xlu0 %579
          %v581 = vld [vmem:[%s185] sm:$0xff]
          %v582 = vld [vmem:[%s185 + $0x8] sm:$0xff]
          %v583 = vld [vmem:[%s185 + $0x10] sm:$0xff]
          %v584 = vld [vmem:[%s185 + $0x18] sm:$0xff]
          %v585 = vld [vmem:[%s185 + $0x20] sm:$0xff]
          %v586 = vld [vmem:[%s185 + $0x28] sm:$0xff]
          %v587 = vld [vmem:[%s185 + $0x30] sm:$0xff]
          %v588 = vld [vmem:[%s185 + $0x38] sm:$0xff]
          %v589 = vld [vmem:[%s185 + $0x40] sm:$0xff]
          %v590 = vld [vmem:[%s185 + $0x48] sm:$0xff]
          %v591 = vld [vmem:[%s185 + $0x50] sm:$0xff]
          %v592 = vld [vmem:[%s185 + $0x58] sm:$0xff]
          %v593 = vld [vmem:[%s185 + $0x60] sm:$0xff]
          %v594 = vld [vmem:[%s185 + $0x68] sm:$0xff]
          %v595 = vld [vmem:[%s185 + $0x70] sm:$0xff]
          %v596 = vld [vmem:[%s185 + $0x78] sm:$0xff]
          %v597 = vmax.f32 %v581, %v550
          %v598 = vmax.f32 %v582, %v552
          %v599 = vmax.f32 %v583, %v554
          %v600 = vmax.f32 %v584, %v556
          %v601 = vmax.f32 %v585, %v558
          %v602 = vmax.f32 %v586, %v560
          %v603 = vmax.f32 %v587, %v562
          %v604 = vmax.f32 %v588, %v564
          %v605 = vmax.f32 %v589, %v566
          %v606 = vmax.f32 %v590, %v568
          %v607 = vmax.f32 %v591, %v570
          %v608 = vmax.f32 %v592, %v572
          %v609 = vmax.f32 %v593, %v574
          %v610 = vmax.f32 %v594, %v576
          %v611 = vmax.f32 %v595, %v578
          %v612 = vmax.f32 %v596, %v580
          %vm613 = vcmask 15368
          %614 = vst.msk [vmem:[%s185] sm:$0xff] %vm613, %v597
          %615 = vst.msk [vmem:[%s185 + $0x8] sm:$0xff] %vm613, %v598
          %616 = vst.msk [vmem:[%s185 + $0x10] sm:$0xff] %vm613, %v599
          %617 = vst.msk [vmem:[%s185 + $0x18] sm:$0xff] %vm613, %v600
          %618 = vst.msk [vmem:[%s185 + $0x20] sm:$0xff] %vm613, %v601
          %619 = vst.msk [vmem:[%s185 + $0x28] sm:$0xff] %vm613, %v602
          %620 = vst.msk [vmem:[%s185 + $0x30] sm:$0xff] %vm613, %v603
          %621 = vst.msk [vmem:[%s185 + $0x38] sm:$0xff] %vm613, %v604
          %622 = vst.msk [vmem:[%s185 + $0x40] sm:$0xff] %vm613, %v605
          %623 = vst.msk [vmem:[%s185 + $0x48] sm:$0xff] %vm613, %v606
          %624 = vst.msk [vmem:[%s185 + $0x50] sm:$0xff] %vm613, %v607
          %625 = vst.msk [vmem:[%s185 + $0x58] sm:$0xff] %vm613, %v608
          %626 = vst.msk [vmem:[%s185 + $0x60] sm:$0xff] %vm613, %v609
          %627 = vst.msk [vmem:[%s185 + $0x68] sm:$0xff] %vm613, %v610
          %628 = vst.msk [vmem:[%s185 + $0x70] sm:$0xff] %vm613, %v611
          %629 = vst.msk [vmem:[%s185 + $0x78] sm:$0xff] %vm613, %v612
          %v630 = vsel %vm371, %v388, %v385
          %v631 = vsel %vm374, %v369, %v630
          %v632 = vsel %vm377, %v370, %v631
          %v633 = vsel %vm380, %v373, %v632
          %v634 = vsel %vm383, %v376, %v633
          %v635 = vsel %vm386, %v379, %v634
          %v636 = vsel %vm389, %v382, %v635
          %vm637 = vcmp.ne.s32.totalorder %v636, 0
          %vm638 = vmand %vm245, %vm637
          %vm639 = vmand %vm246, %vm637
          %vm640 = vmand %vm247, %vm637
          %vm641 = vmand %vm248, %vm637
          %vm642 = vmand %vm249, %vm637
          %vm643 = vmand %vm250, %vm637
          %vm644 = vmand %vm251, %vm637
          %vm645 = vmand %vm252, %vm637
          %vm646 = vmand %vm253, %vm637
          %vm647 = vmand %vm254, %vm637
          %vm648 = vmand %vm255, %vm637
          %vm649 = vmand %vm256, %vm637
          %vm650 = vmand %vm257, %vm637
          %vm651 = vmand %vm258, %vm637
          %vm652 = vmand %vm259, %vm637
          %vm653 = vmand %vm260, %vm637
          %v654 = vsel %vm638, %v411, 0.0
          %v655 = vsel %vm639, %v411, 0.0
          %v656 = vsel %vm640, %v411, 0.0
          %v657 = vsel %vm641, %v411, 0.0
          %v658 = vsel %vm642, %v411, 0.0
          %v659 = vsel %vm643, %v411, 0.0
          %v660 = vsel %vm644, %v411, 0.0
          %v661 = vsel %vm645, %v411, 0.0
          %v662 = vsel %vm646, %v411, 0.0
          %v663 = vsel %vm647, %v411, 0.0
          %v664 = vsel %vm648, %v411, 0.0
          %v665 = vsel %vm649, %v411, 0.0
          %v666 = vsel %vm650, %v411, 0.0
          %v667 = vsel %vm651, %v411, 0.0
          %v668 = vsel %vm652, %v411, 0.0
          %v669 = vsel %vm653, %v411, 0.0
          %670 = vmax.xlane.f32.xlu0 %v654
          %v671 = vpop.xlane.xlu0 %670
          %672 = vmax.xlane.f32.xlu0 %v655
          %v673 = vpop.xlane.xlu0 %672
          %674 = vmax.xlane.f32.xlu0 %v656
          %v675 = vpop.xlane.xlu0 %674
          %676 = vmax.xlane.f32.xlu0 %v657
          %v677 = vpop.xlane.xlu0 %676
          %678 = vmax.xlane.f32.xlu0 %v658
          %v679 = vpop.xlane.xlu0 %678
          %680 = vmax.xlane.f32.xlu0 %v659
          %v681 = vpop.xlane.xlu0 %680
          %682 = vmax.xlane.f32.xlu0 %v660
          %v683 = vpop.xlane.xlu0 %682
          %684 = vmax.xlane.f32.xlu0 %v661
          %v685 = vpop.xlane.xlu0 %684
          %686 = vmax.xlane.f32.xlu0 %v662
          %v687 = vpop.xlane.xlu0 %686
          %688 = vmax.xlane.f32.xlu0 %v663
          %v689 = vpop.xlane.xlu0 %688
          %690 = vmax.xlane.f32.xlu0 %v664
          %v691 = vpop.xlane.xlu0 %690
          %692 = vmax.xlane.f32.xlu0 %v665
          %v693 = vpop.xlane.xlu0 %692
          %694 = vmax.xlane.f32.xlu0 %v666
          %v695 = vpop.xlane.xlu0 %694
          %696 = vmax.xlane.f32.xlu0 %v667
          %v697 = vpop.xlane.xlu0 %696
          %698 = vmax.xlane.f32.xlu0 %v668
          %v699 = vpop.xlane.xlu0 %698
          %700 = vmax.xlane.f32.xlu0 %v669
          %v701 = vpop.xlane.xlu0 %700
          %v702 = vld [vmem:[%s185] sm:$0xff]
          %v703 = vld [vmem:[%s185 + $0x8] sm:$0xff]
          %v704 = vld [vmem:[%s185 + $0x10] sm:$0xff]
          %v705 = vld [vmem:[%s185 + $0x18] sm:$0xff]
          %v706 = vld [vmem:[%s185 + $0x20] sm:$0xff]
          %v707 = vld [vmem:[%s185 + $0x28] sm:$0xff]
          %v708 = vld [vmem:[%s185 + $0x30] sm:$0xff]
          %v709 = vld [vmem:[%s185 + $0x38] sm:$0xff]
          %v710 = vld [vmem:[%s185 + $0x40] sm:$0xff]
          %v711 = vld [vmem:[%s185 + $0x48] sm:$0xff]
          %v712 = vld [vmem:[%s185 + $0x50] sm:$0xff]
          %v713 = vld [vmem:[%s185 + $0x58] sm:$0xff]
          %v714 = vld [vmem:[%s185 + $0x60] sm:$0xff]
          %v715 = vld [vmem:[%s185 + $0x68] sm:$0xff]
          %v716 = vld [vmem:[%s185 + $0x70] sm:$0xff]
          %v717 = vld [vmem:[%s185 + $0x78] sm:$0xff]
          %v718 = vmax.f32 %v702, %v671
          %v719 = vmax.f32 %v703, %v673
          %v720 = vmax.f32 %v704, %v675
          %v721 = vmax.f32 %v705, %v677
          %v722 = vmax.f32 %v706, %v679
          %v723 = vmax.f32 %v707, %v681
          %v724 = vmax.f32 %v708, %v683
          %v725 = vmax.f32 %v709, %v685
          %v726 = vmax.f32 %v710, %v687
          %v727 = vmax.f32 %v711, %v689
          %v728 = vmax.f32 %v712, %v691
          %v729 = vmax.f32 %v713, %v693
          %v730 = vmax.f32 %v714, %v695
          %v731 = vmax.f32 %v715, %v697
          %v732 = vmax.f32 %v716, %v699
          %v733 = vmax.f32 %v717, %v701
          %vm734 = vcmask 23568
          %735 = vst.msk [vmem:[%s185] sm:$0xff] %vm734, %v718
          %736 = vst.msk [vmem:[%s185 + $0x8] sm:$0xff] %vm734, %v719
          %737 = vst.msk [vmem:[%s185 + $0x10] sm:$0xff] %vm734, %v720
          %738 = vst.msk [vmem:[%s185 + $0x18] sm:$0xff] %vm734, %v721
          %739 = vst.msk [vmem:[%s185 + $0x20] sm:$0xff] %vm734, %v722
          %740 = vst.msk [vmem:[%s185 + $0x28] sm:$0xff] %vm734, %v723
          %741 = vst.msk [vmem:[%s185 + $0x30] sm:$0xff] %vm734, %v724
          %742 = vst.msk [vmem:[%s185 + $0x38] sm:$0xff] %vm734, %v725
          %743 = vst.msk [vmem:[%s185 + $0x40] sm:$0xff] %vm734, %v726
          %744 = vst.msk [vmem:[%s185 + $0x48] sm:$0xff] %vm734, %v727
          %745 = vst.msk [vmem:[%s185 + $0x50] sm:$0xff] %vm734, %v728
          %746 = vst.msk [vmem:[%s185 + $0x58] sm:$0xff] %vm734, %v729
          %747 = vst.msk [vmem:[%s185 + $0x60] sm:$0xff] %vm734, %v730
          %748 = vst.msk [vmem:[%s185 + $0x68] sm:$0xff] %vm734, %v731
          %749 = vst.msk [vmem:[%s185 + $0x70] sm:$0xff] %vm734, %v732
          %750 = vst.msk [vmem:[%s185 + $0x78] sm:$0xff] %vm734, %v733
          %v751 = vsel %vm371, %v385, %v382
          %v752 = vsel %vm374, %v388, %v751
          %v753 = vsel %vm377, %v369, %v752
          %v754 = vsel %vm380, %v370, %v753
          %v755 = vsel %vm383, %v373, %v754
          %v756 = vsel %vm386, %v376, %v755
          %v757 = vsel %vm389, %v379, %v756
          %vm758 = vcmp.ne.s32.totalorder %v757, 0
          %vm759 = vmand %vm245, %vm758
          %vm760 = vmand %vm246, %vm758
          %vm761 = vmand %vm247, %vm758
          %vm762 = vmand %vm248, %vm758
          %vm763 = vmand %vm249, %vm758
          %vm764 = vmand %vm250, %vm758
          %vm765 = vmand %vm251, %vm758
          %vm766 = vmand %vm252, %vm758
          %vm767 = vmand %vm253, %vm758
          %vm768 = vmand %vm254, %vm758
          %vm769 = vmand %vm255, %vm758
          %vm770 = vmand %vm256, %vm758
          %vm771 = vmand %vm257, %vm758
          %vm772 = vmand %vm258, %vm758
          %vm773 = vmand %vm259, %vm758
          %vm774 = vmand %vm260, %vm758
          %v775 = vsel %vm759, %v411, 0.0
          %v776 = vsel %vm760, %v411, 0.0
          %v777 = vsel %vm761, %v411, 0.0
          %v778 = vsel %vm762, %v411, 0.0
          %v779 = vsel %vm763, %v411, 0.0
          %v780 = vsel %vm764, %v411, 0.0
          %v781 = vsel %vm765, %v411, 0.0
          %v782 = vsel %vm766, %v411, 0.0
          %v783 = vsel %vm767, %v411, 0.0
          %v784 = vsel %vm768, %v411, 0.0
          %v785 = vsel %vm769, %v411, 0.0
          %v786 = vsel %vm770, %v411, 0.0
          %v787 = vsel %vm771, %v411, 0.0
          %v788 = vsel %vm772, %v411, 0.0
          %v789 = vsel %vm773, %v411, 0.0
          %v790 = vsel %vm774, %v411, 0.0
          %791 = vmax.xlane.f32.xlu0 %v775
          %v792 = vpop.xlane.xlu0 %791
          %793 = vmax.xlane.f32.xlu0 %v776
          %v794 = vpop.xlane.xlu0 %793
          %795 = vmax.xlane.f32.xlu0 %v777
          %v796 = vpop.xlane.xlu0 %795
          %797 = vmax.xlane.f32.xlu0 %v778
          %v798 = vpop.xlane.xlu0 %797
          %799 = vmax.xlane.f32.xlu0 %v779
          %v800 = vpop.xlane.xlu0 %799
          %801 = vmax.xlane.f32.xlu0 %v780
          %v802 = vpop.xlane.xlu0 %801
          %803 = vmax.xlane.f32.xlu0 %v781
          %v804 = vpop.xlane.xlu0 %803
          %805 = vmax.xlane.f32.xlu0 %v782
          %v806 = vpop.xlane.xlu0 %805
          %807 = vmax.xlane.f32.xlu0 %v783
          %v808 = vpop.xlane.xlu0 %807
          %809 = vmax.xlane.f32.xlu0 %v784
          %v810 = vpop.xlane.xlu0 %809
          %811 = vmax.xlane.f32.xlu0 %v785
          %v812 = vpop.xlane.xlu0 %811
          %813 = vmax.xlane.f32.xlu0 %v786
          %v814 = vpop.xlane.xlu0 %813
          %815 = vmax.xlane.f32.xlu0 %v787
          %v816 = vpop.xlane.xlu0 %815
          %817 = vmax.xlane.f32.xlu0 %v788
          %v818 = vpop.xlane.xlu0 %817
          %819 = vmax.xlane.f32.xlu0 %v789
          %v820 = vpop.xlane.xlu0 %819
          %821 = vmax.xlane.f32.xlu0 %v790
          %v822 = vpop.xlane.xlu0 %821
          %v823 = vld [vmem:[%s185] sm:$0xff]
          %v824 = vld [vmem:[%s185 + $0x8] sm:$0xff]
          %v825 = vld [vmem:[%s185 + $0x10] sm:$0xff]
          %v826 = vld [vmem:[%s185 + $0x18] sm:$0xff]
          %v827 = vld [vmem:[%s185 + $0x20] sm:$0xff]
          %v828 = vld [vmem:[%s185 + $0x28] sm:$0xff]
          %v829 = vld [vmem:[%s185 + $0x30] sm:$0xff]
          %v830 = vld [vmem:[%s185 + $0x38] sm:$0xff]
          %v831 = vld [vmem:[%s185 + $0x40] sm:$0xff]
          %v832 = vld [vmem:[%s185 + $0x48] sm:$0xff]
          %v833 = vld [vmem:[%s185 + $0x50] sm:$0xff]
          %v834 = vld [vmem:[%s185 + $0x58] sm:$0xff]
          %v835 = vld [vmem:[%s185 + $0x60] sm:$0xff]
          %v836 = vld [vmem:[%s185 + $0x68] sm:$0xff]
          %v837 = vld [vmem:[%s185 + $0x70] sm:$0xff]
          %v838 = vld [vmem:[%s185 + $0x78] sm:$0xff]
          %v839 = vmax.f32 %v823, %v792
          %v840 = vmax.f32 %v824, %v794
          %v841 = vmax.f32 %v825, %v796
          %v842 = vmax.f32 %v826, %v798
          %v843 = vmax.f32 %v827, %v800
          %v844 = vmax.f32 %v828, %v802
          %v845 = vmax.f32 %v829, %v804
          %v846 = vmax.f32 %v830, %v806
          %v847 = vmax.f32 %v831, %v808
          %v848 = vmax.f32 %v832, %v810
          %v849 = vmax.f32 %v833, %v812
          %v850 = vmax.f32 %v834, %v814
          %v851 = vmax.f32 %v835, %v816
          %v852 = vmax.f32 %v836, %v818
          %v853 = vmax.f32 %v837, %v820
          %v854 = vmax.f32 %v838, %v822
          %vm855 = vcmask 31768
          %856 = vst.msk [vmem:[%s185] sm:$0xff] %vm855, %v839
          %857 = vst.msk [vmem:[%s185 + $0x8] sm:$0xff] %vm855, %v840
          %858 = vst.msk [vmem:[%s185 + $0x10] sm:$0xff] %vm855, %v841
          %859 = vst.msk [vmem:[%s185 + $0x18] sm:$0xff] %vm855, %v842
          %860 = vst.msk [vmem:[%s185 + $0x20] sm:$0xff] %vm855, %v843
          %861 = vst.msk [vmem:[%s185 + $0x28] sm:$0xff] %vm855, %v844
          %862 = vst.msk [vmem:[%s185 + $0x30] sm:$0xff] %vm855, %v845
          %863 = vst.msk [vmem:[%s185 + $0x38] sm:$0xff] %vm855, %v846
          %864 = vst.msk [vmem:[%s185 + $0x40] sm:$0xff] %vm855, %v847
          %865 = vst.msk [vmem:[%s185 + $0x48] sm:$0xff] %vm855, %v848
          %866 = vst.msk [vmem:[%s185 + $0x50] sm:$0xff] %vm855, %v849
          %867 = vst.msk [vmem:[%s185 + $0x58] sm:$0xff] %vm855, %v850
          %868 = vst.msk [vmem:[%s185 + $0x60] sm:$0xff] %vm855, %v851
          %869 = vst.msk [vmem:[%s185 + $0x68] sm:$0xff] %vm855, %v852
          %870 = vst.msk [vmem:[%s185 + $0x70] sm:$0xff] %vm855, %v853
          %871 = vst.msk [vmem:[%s185 + $0x78] sm:$0xff] %vm855, %v854
          %v872 = vsel %vm371, %v382, %v379
          %v873 = vsel %vm374, %v385, %v872
          %v874 = vsel %vm377, %v388, %v873
          %v875 = vsel %vm380, %v369, %v874
          %v876 = vsel %vm383, %v370, %v875
          %v877 = vsel %vm386, %v373, %v876
          %v878 = vsel %vm389, %v376, %v877
          %vm879 = vcmp.ne.s32.totalorder %v878, 0
          %vm880 = vmand %vm245, %vm879
          %vm881 = vmand %vm246, %vm879
          %vm882 = vmand %vm247, %vm879
          %vm883 = vmand %vm248, %vm879
          %vm884 = vmand %vm249, %vm879
          %vm885 = vmand %vm250, %vm879
          %vm886 = vmand %vm251, %vm879
          %vm887 = vmand %vm252, %vm879
          %vm888 = vmand %vm253, %vm879
          %vm889 = vmand %vm254, %vm879
          %vm890 = vmand %vm255, %vm879
          %vm891 = vmand %vm256, %vm879
          %vm892 = vmand %vm257, %vm879
          %vm893 = vmand %vm258, %vm879
          %vm894 = vmand %vm259, %vm879
          %vm895 = vmand %vm260, %vm879
          %v896 = vsel %vm880, %v411, 0.0
          %v897 = vsel %vm881, %v411, 0.0
          %v898 = vsel %vm882, %v411, 0.0
          %v899 = vsel %vm883, %v411, 0.0
          %v900 = vsel %vm884, %v411, 0.0
          %v901 = vsel %vm885, %v411, 0.0
          %v902 = vsel %vm886, %v411, 0.0
          %v903 = vsel %vm887, %v411, 0.0
          %v904 = vsel %vm888, %v411, 0.0
          %v905 = vsel %vm889, %v411, 0.0
          %v906 = vsel %vm890, %v411, 0.0
          %v907 = vsel %vm891, %v411, 0.0
          %v908 = vsel %vm892, %v411, 0.0
          %v909 = vsel %vm893, %v411, 0.0
          %v910 = vsel %vm894, %v411, 0.0
          %v911 = vsel %vm895, %v411, 0.0
          %912 = vmax.xlane.f32.xlu0 %v896
          %v913 = vpop.xlane.xlu0 %912
          %914 = vmax.xlane.f32.xlu0 %v897
          %v915 = vpop.xlane.xlu0 %914
          %916 = vmax.xlane.f32.xlu0 %v898
          %v917 = vpop.xlane.xlu0 %916
          %918 = vmax.xlane.f32.xlu0 %v899
          %v919 = vpop.xlane.xlu0 %918
          %920 = vmax.xlane.f32.xlu0 %v900
          %v921 = vpop.xlane.xlu0 %920
          %922 = vmax.xlane.f32.xlu0 %v901
          %v923 = vpop.xlane.xlu0 %922
          %924 = vmax.xlane.f32.xlu0 %v902
          %v925 = vpop.xlane.xlu0 %924
          %926 = vmax.xlane.f32.xlu0 %v903
          %v927 = vpop.xlane.xlu0 %926
          %928 = vmax.xlane.f32.xlu0 %v904
          %v929 = vpop.xlane.xlu0 %928
          %930 = vmax.xlane.f32.xlu0 %v905
          %v931 = vpop.xlane.xlu0 %930
          %932 = vmax.xlane.f32.xlu0 %v906
          %v933 = vpop.xlane.xlu0 %932
          %934 = vmax.xlane.f32.xlu0 %v907
          %v935 = vpop.xlane.xlu0 %934
          %936 = vmax.xlane.f32.xlu0 %v908
          %v937 = vpop.xlane.xlu0 %936
          %938 = vmax.xlane.f32.xlu0 %v909
          %v939 = vpop.xlane.xlu0 %938
          %940 = vmax.xlane.f32.xlu0 %v910
          %v941 = vpop.xlane.xlu0 %940
          %942 = vmax.xlane.f32.xlu0 %v911
          %v943 = vpop.xlane.xlu0 %942
          %v944 = vld [vmem:[%s185] sm:$0xff]
          %v945 = vld [vmem:[%s185 + $0x8] sm:$0xff]
          %v946 = vld [vmem:[%s185 + $0x10] sm:$0xff]
          %v947 = vld [vmem:[%s185 + $0x18] sm:$0xff]
          %v948 = vld [vmem:[%s185 + $0x20] sm:$0xff]
          %v949 = vld [vmem:[%s185 + $0x28] sm:$0xff]
          %v950 = vld [vmem:[%s185 + $0x30] sm:$0xff]
          %v951 = vld [vmem:[%s185 + $0x38] sm:$0xff]
          %v952 = vld [vmem:[%s185 + $0x40] sm:$0xff]
          %v953 = vld [vmem:[%s185 + $0x48] sm:$0xff]
          %v954 = vld [vmem:[%s185 + $0x50] sm:$0xff]
          %v955 = vld [vmem:[%s185 + $0x58] sm:$0xff]
          %v956 = vld [vmem:[%s185 + $0x60] sm:$0xff]
          %v957 = vld [vmem:[%s185 + $0x68] sm:$0xff]
          %v958 = vld [vmem:[%s185 + $0x70] sm:$0xff]
          %v959 = vld [vmem:[%s185 + $0x78] sm:$0xff]
          %v960 = vmax.f32 %v944, %v913
          %v961 = vmax.f32 %v945, %v915
          %v962 = vmax.f32 %v946, %v917
          %v963 = vmax.f32 %v947, %v919
          %v964 = vmax.f32 %v948, %v921
          %v965 = vmax.f32 %v949, %v923
          %v966 = vmax.f32 %v950, %v925
          %v967 = vmax.f32 %v951, %v927
          %v968 = vmax.f32 %v952, %v929
          %v969 = vmax.f32 %v953, %v931
          %v970 = vmax.f32 %v954, %v933
          %v971 = vmax.f32 %v955, %v935
          %v972 = vmax.f32 %v956, %v937
          %v973 = vmax.f32 %v957, %v939
          %v974 = vmax.f32 %v958, %v941
          %v975 = vmax.f32 %v959, %v943
          %vm976 = vcmask 39968
          %977 = vst.msk [vmem:[%s185] sm:$0xff] %vm976, %v960
          %978 = vst.msk [vmem:[%s185 + $0x8] sm:$0xff] %vm976, %v961
          %979 = vst.msk [vmem:[%s185 + $0x10] sm:$0xff] %vm976, %v962
          %980 = vst.msk [vmem:[%s185 + $0x18] sm:$0xff] %vm976, %v963
          %981 = vst.msk [vmem:[%s185 + $0x20] sm:$0xff] %vm976, %v964
          %982 = vst.msk [vmem:[%s185 + $0x28] sm:$0xff] %vm976, %v965
          %983 = vst.msk [vmem:[%s185 + $0x30] sm:$0xff] %vm976, %v966
          %984 = vst.msk [vmem:[%s185 + $0x38] sm:$0xff] %vm976, %v967
          %985 = vst.msk [vmem:[%s185 + $0x40] sm:$0xff] %vm976, %v968
          %986 = vst.msk [vmem:[%s185 + $0x48] sm:$0xff] %vm976, %v969
          %987 = vst.msk [vmem:[%s185 + $0x50] sm:$0xff] %vm976, %v970
          %988 = vst.msk [vmem:[%s185 + $0x58] sm:$0xff] %vm976, %v971
          %989 = vst.msk [vmem:[%s185 + $0x60] sm:$0xff] %vm976, %v972
          %990 = vst.msk [vmem:[%s185 + $0x68] sm:$0xff] %vm976, %v973
          %991 = vst.msk [vmem:[%s185 + $0x70] sm:$0xff] %vm976, %v974
          %992 = vst.msk [vmem:[%s185 + $0x78] sm:$0xff] %vm976, %v975
          %v993 = vsel %vm371, %v379, %v376
          %v994 = vsel %vm374, %v382, %v993
          %v995 = vsel %vm377, %v385, %v994
          %v996 = vsel %vm380, %v388, %v995
          %v997 = vsel %vm383, %v369, %v996
          %v998 = vsel %vm386, %v370, %v997
          %v999 = vsel %vm389, %v373, %v998
          %vm1000 = vcmp.ne.s32.totalorder %v999, 0
          %vm1001 = vmand %vm245, %vm1000
          %vm1002 = vmand %vm246, %vm1000
          %vm1003 = vmand %vm247, %vm1000
          %vm1004 = vmand %vm248, %vm1000
          %vm1005 = vmand %vm249, %vm1000
          %vm1006 = vmand %vm250, %vm1000
          %vm1007 = vmand %vm251, %vm1000
          %vm1008 = vmand %vm252, %vm1000
          %vm1009 = vmand %vm253, %vm1000
          %vm1010 = vmand %vm254, %vm1000
          %vm1011 = vmand %vm255, %vm1000
          %vm1012 = vmand %vm256, %vm1000
          %vm1013 = vmand %vm257, %vm1000
          %vm1014 = vmand %vm258, %vm1000
          %vm1015 = vmand %vm259, %vm1000
          %vm1016 = vmand %vm260, %vm1000
          %v1017 = vsel %vm1001, %v411, 0.0
          %v1018 = vsel %vm1002, %v411, 0.0
          %v1019 = vsel %vm1003, %v411, 0.0
          %v1020 = vsel %vm1004, %v411, 0.0
          %v1021 = vsel %vm1005, %v411, 0.0
          %v1022 = vsel %vm1006, %v411, 0.0
          %v1023 = vsel %vm1007, %v411, 0.0
          %v1024 = vsel %vm1008, %v411, 0.0
          %v1025 = vsel %vm1009, %v411, 0.0
          %v1026 = vsel %vm1010, %v411, 0.0
          %v1027 = vsel %vm1011, %v411, 0.0
          %v1028 = vsel %vm1012, %v411, 0.0
          %v1029 = vsel %vm1013, %v411, 0.0
          %v1030 = vsel %vm1014, %v411, 0.0
          %v1031 = vsel %vm1015, %v411, 0.0
          %v1032 = vsel %vm1016, %v411, 0.0
          %1033 = vmax.xlane.f32.xlu0 %v1017
          %v1034 = vpop.xlane.xlu0 %1033
          %1035 = vmax.xlane.f32.xlu0 %v1018
          %v1036 = vpop.xlane.xlu0 %1035
          %1037 = vmax.xlane.f32.xlu0 %v1019
          %v1038 = vpop.xlane.xlu0 %1037
          %1039 = vmax.xlane.f32.xlu0 %v1020
          %v1040 = vpop.xlane.xlu0 %1039
          %1041 = vmax.xlane.f32.xlu0 %v1021
          %v1042 = vpop.xlane.xlu0 %1041
          %1043 = vmax.xlane.f32.xlu0 %v1022
          %v1044 = vpop.xlane.xlu0 %1043
          %1045 = vmax.xlane.f32.xlu0 %v1023
          %v1046 = vpop.xlane.xlu0 %1045
          %1047 = vmax.xlane.f32.xlu0 %v1024
          %v1048 = vpop.xlane.xlu0 %1047
          %1049 = vmax.xlane.f32.xlu0 %v1025
          %v1050 = vpop.xlane.xlu0 %1049
          %1051 = vmax.xlane.f32.xlu0 %v1026
          %v1052 = vpop.xlane.xlu0 %1051
          %1053 = vmax.xlane.f32.xlu0 %v1027
          %v1054 = vpop.xlane.xlu0 %1053
          %1055 = vmax.xlane.f32.xlu0 %v1028
          %v1056 = vpop.xlane.xlu0 %1055
          %1057 = vmax.xlane.f32.xlu0 %v1029
          %v1058 = vpop.xlane.xlu0 %1057
          %1059 = vmax.xlane.f32.xlu0 %v1030
          %v1060 = vpop.xlane.xlu0 %1059
          %1061 = vmax.xlane.f32.xlu0 %v1031
          %v1062 = vpop.xlane.xlu0 %1061
          %1063 = vmax.xlane.f32.xlu0 %v1032
          %v1064 = vpop.xlane.xlu0 %1063
          %v1065 = vld [vmem:[%s185] sm:$0xff]
          %v1066 = vld [vmem:[%s185 + $0x8] sm:$0xff]
          %v1067 = vld [vmem:[%s185 + $0x10] sm:$0xff]
          %v1068 = vld [vmem:[%s185 + $0x18] sm:$0xff]
          %v1069 = vld [vmem:[%s185 + $0x20] sm:$0xff]
          %v1070 = vld [vmem:[%s185 + $0x28] sm:$0xff]
          %v1071 = vld [vmem:[%s185 + $0x30] sm:$0xff]
          %v1072 = vld [vmem:[%s185 + $0x38] sm:$0xff]
          %v1073 = vld [vmem:[%s185 + $0x40] sm:$0xff]
          %v1074 = vld [vmem:[%s185 + $0x48] sm:$0xff]
          %v1075 = vld [vmem:[%s185 + $0x50] sm:$0xff]
          %v1076 = vld [vmem:[%s185 + $0x58] sm:$0xff]
          %v1077 = vld [vmem:[%s185 + $0x60] sm:$0xff]
          %v1078 = vld [vmem:[%s185 + $0x68] sm:$0xff]
          %v1079 = vld [vmem:[%s185 + $0x70] sm:$0xff]
          %v1080 = vld [vmem:[%s185 + $0x78] sm:$0xff]
          %v1081 = vmax.f32 %v1065, %v1034
          %v1082 = vmax.f32 %v1066, %v1036
          %v1083 = vmax.f32 %v1067, %v1038
          %v1084 = vmax.f32 %v1068, %v1040
          %v1085 = vmax.f32 %v1069, %v1042
          %v1086 = vmax.f32 %v1070, %v1044
          %v1087 = vmax.f32 %v1071, %v1046
          %v1088 = vmax.f32 %v1072, %v1048
          %v1089 = vmax.f32 %v1073, %v1050
          %v1090 = vmax.f32 %v1074, %v1052
          %v1091 = vmax.f32 %v1075, %v1054
          %v1092 = vmax.f32 %v1076, %v1056
          %v1093 = vmax.f32 %v1077, %v1058
          %v1094 = vmax.f32 %v1078, %v1060
          %v1095 = vmax.f32 %v1079, %v1062
          %v1096 = vmax.f32 %v1080, %v1064
          %vm1097 = vcmask 48168
          %1098 = vst.msk [vmem:[%s185] sm:$0xff] %vm1097, %v1081
          %1099 = vst.msk [vmem:[%s185 + $0x8] sm:$0xff] %vm1097, %v1082
          %1100 = vst.msk [vmem:[%s185 + $0x10] sm:$0xff] %vm1097, %v1083
          %1101 = vst.msk [vmem:[%s185 + $0x18] sm:$0xff] %vm1097, %v1084
          %1102 = vst.msk [vmem:[%s185 + $0x20] sm:$0xff] %vm1097, %v1085
          %1103 = vst.msk [vmem:[%s185 + $0x28] sm:$0xff] %vm1097, %v1086
          %1104 = vst.msk [vmem:[%s185 + $0x30] sm:$0xff] %vm1097, %v1087
          %1105 = vst.msk [vmem:[%s185 + $0x38] sm:$0xff] %vm1097, %v1088
          %1106 = vst.msk [vmem:[%s185 + $0x40] sm:$0xff] %vm1097, %v1089
          %1107 = vst.msk [vmem:[%s185 + $0x48] sm:$0xff] %vm1097, %v1090
          %1108 = vst.msk [vmem:[%s185 + $0x50] sm:$0xff] %vm1097, %v1091
          %1109 = vst.msk [vmem:[%s185 + $0x58] sm:$0xff] %vm1097, %v1092
          %1110 = vst.msk [vmem:[%s185 + $0x60] sm:$0xff] %vm1097, %v1093
          %1111 = vst.msk [vmem:[%s185 + $0x68] sm:$0xff] %vm1097, %v1094
          %1112 = vst.msk [vmem:[%s185 + $0x70] sm:$0xff] %vm1097, %v1095
          %1113 = vst.msk [vmem:[%s185 + $0x78] sm:$0xff] %vm1097, %v1096
          %v1114 = vsel %vm371, %v376, %v373
          %v1115 = vsel %vm374, %v379, %v1114
          %v1116 = vsel %vm377, %v382, %v1115
          %v1117 = vsel %vm380, %v385, %v1116
          %v1118 = vsel %vm383, %v388, %v1117
          %v1119 = vsel %vm386, %v369, %v1118
          %v1120 = vsel %vm389, %v370, %v1119
          %vm1121 = vcmp.ne.s32.totalorder %v1120, 0
          %vm1122 = vmand %vm245, %vm1121
          %vm1123 = vmand %vm246, %vm1121
          %vm1124 = vmand %vm247, %vm1121
          %vm1125 = vmand %vm248, %vm1121
          %vm1126 = vmand %vm249, %vm1121
          %vm1127 = vmand %vm250, %vm1121
          %vm1128 = vmand %vm251, %vm1121
          %vm1129 = vmand %vm252, %vm1121
          %vm1130 = vmand %vm253, %vm1121
          %vm1131 = vmand %vm254, %vm1121
          %vm1132 = vmand %vm255, %vm1121
          %vm1133 = vmand %vm256, %vm1121
          %vm1134 = vmand %vm257, %vm1121
          %vm1135 = vmand %vm258, %vm1121
          %vm1136 = vmand %vm259, %vm1121
          %vm1137 = vmand %vm260, %vm1121
          %v1138 = vsel %vm1122, %v411, 0.0
          %v1139 = vsel %vm1123, %v411, 0.0
          %v1140 = vsel %vm1124, %v411, 0.0
          %v1141 = vsel %vm1125, %v411, 0.0
          %v1142 = vsel %vm1126, %v411, 0.0
          %v1143 = vsel %vm1127, %v411, 0.0
          %v1144 = vsel %vm1128, %v411, 0.0
          %v1145 = vsel %vm1129, %v411, 0.0
          %v1146 = vsel %vm1130, %v411, 0.0
          %v1147 = vsel %vm1131, %v411, 0.0
          %v1148 = vsel %vm1132, %v411, 0.0
          %v1149 = vsel %vm1133, %v411, 0.0
          %v1150 = vsel %vm1134, %v411, 0.0
          %v1151 = vsel %vm1135, %v411, 0.0
          %v1152 = vsel %vm1136, %v411, 0.0
          %v1153 = vsel %vm1137, %v411, 0.0
          %1154 = vmax.xlane.f32.xlu0 %v1138
          %v1155 = vpop.xlane.xlu0 %1154
          %1156 = vmax.xlane.f32.xlu0 %v1139
          %v1157 = vpop.xlane.xlu0 %1156
          %1158 = vmax.xlane.f32.xlu0 %v1140
          %v1159 = vpop.xlane.xlu0 %1158
          %1160 = vmax.xlane.f32.xlu0 %v1141
          %v1161 = vpop.xlane.xlu0 %1160
          %1162 = vmax.xlane.f32.xlu0 %v1142
          %v1163 = vpop.xlane.xlu0 %1162
          %1164 = vmax.xlane.f32.xlu0 %v1143
          %v1165 = vpop.xlane.xlu0 %1164
          %1166 = vmax.xlane.f32.xlu0 %v1144
          %v1167 = vpop.xlane.xlu0 %1166
          %1168 = vmax.xlane.f32.xlu0 %v1145
          %v1169 = vpop.xlane.xlu0 %1168
          %1170 = vmax.xlane.f32.xlu0 %v1146
          %v1171 = vpop.xlane.xlu0 %1170
          %1172 = vmax.xlane.f32.xlu0 %v1147
          %v1173 = vpop.xlane.xlu0 %1172
          %1174 = vmax.xlane.f32.xlu0 %v1148
          %v1175 = vpop.xlane.xlu0 %1174
          %1176 = vmax.xlane.f32.xlu0 %v1149
          %v1177 = vpop.xlane.xlu0 %1176
          %1178 = vmax.xlane.f32.xlu0 %v1150
          %v1179 = vpop.xlane.xlu0 %1178
          %1180 = vmax.xlane.f32.xlu0 %v1151
          %v1181 = vpop.xlane.xlu0 %1180
          %1182 = vmax.xlane.f32.xlu0 %v1152
          %v1183 = vpop.xlane.xlu0 %1182
          %1184 = vmax.xlane.f32.xlu0 %v1153
          %v1185 = vpop.xlane.xlu0 %1184
          %v1186 = vld [vmem:[%s185] sm:$0xff]
          %v1187 = vld [vmem:[%s185 + $0x8] sm:$0xff]
          %v1188 = vld [vmem:[%s185 + $0x10] sm:$0xff]
          %v1189 = vld [vmem:[%s185 + $0x18] sm:$0xff]
          %v1190 = vld [vmem:[%s185 + $0x20] sm:$0xff]
          %v1191 = vld [vmem:[%s185 + $0x28] sm:$0xff]
          %v1192 = vld [vmem:[%s185 + $0x30] sm:$0xff]
          %v1193 = vld [vmem:[%s185 + $0x38] sm:$0xff]
          %v1194 = vld [vmem:[%s185 + $0x40] sm:$0xff]
          %v1195 = vld [vmem:[%s185 + $0x48] sm:$0xff]
          %v1196 = vld [vmem:[%s185 + $0x50] sm:$0xff]
          %v1197 = vld [vmem:[%s185 + $0x58] sm:$0xff]
          %v1198 = vld [vmem:[%s185 + $0x60] sm:$0xff]
          %v1199 = vld [vmem:[%s185 + $0x68] sm:$0xff]
          %v1200 = vld [vmem:[%s185 + $0x70] sm:$0xff]
          %v1201 = vld [vmem:[%s185 + $0x78] sm:$0xff]
          %v1202 = vmax.f32 %v1186, %v1155
          %v1203 = vmax.f32 %v1187, %v1157
          %v1204 = vmax.f32 %v1188, %v1159
          %v1205 = vmax.f32 %v1189, %v1161
          %v1206 = vmax.f32 %v1190, %v1163
          %v1207 = vmax.f32 %v1191, %v1165
          %v1208 = vmax.f32 %v1192, %v1167
          %v1209 = vmax.f32 %v1193, %v1169
          %v1210 = vmax.f32 %v1194, %v1171
          %v1211 = vmax.f32 %v1195, %v1173
          %v1212 = vmax.f32 %v1196, %v1175
          %v1213 = vmax.f32 %v1197, %v1177
          %v1214 = vmax.f32 %v1198, %v1179
          %v1215 = vmax.f32 %v1199, %v1181
          %v1216 = vmax.f32 %v1200, %v1183
          %v1217 = vmax.f32 %v1201, %v1185
          %vm1218 = vcmask 56368
          %1219 = vst.msk [vmem:[%s185] sm:$0xff] %vm1218, %v1202
          %1220 = vst.msk [vmem:[%s185 + $0x8] sm:$0xff] %vm1218, %v1203
          %1221 = vst.msk [vmem:[%s185 + $0x10] sm:$0xff] %vm1218, %v1204
          %1222 = vst.msk [vmem:[%s185 + $0x18] sm:$0xff] %vm1218, %v1205
          %1223 = vst.msk [vmem:[%s185 + $0x20] sm:$0xff] %vm1218, %v1206
          %1224 = vst.msk [vmem:[%s185 + $0x28] sm:$0xff] %vm1218, %v1207
          %1225 = vst.msk [vmem:[%s185 + $0x30] sm:$0xff] %vm1218, %v1208
          %1226 = vst.msk [vmem:[%s185 + $0x38] sm:$0xff] %vm1218, %v1209
          %1227 = vst.msk [vmem:[%s185 + $0x40] sm:$0xff] %vm1218, %v1210
          %1228 = vst.msk [vmem:[%s185 + $0x48] sm:$0xff] %vm1218, %v1211
          %1229 = vst.msk [vmem:[%s185 + $0x50] sm:$0xff] %vm1218, %v1212
          %1230 = vst.msk [vmem:[%s185 + $0x58] sm:$0xff] %vm1218, %v1213
          %1231 = vst.msk [vmem:[%s185 + $0x60] sm:$0xff] %vm1218, %v1214
          %1232 = vst.msk [vmem:[%s185 + $0x68] sm:$0xff] %vm1218, %v1215
          %1233 = vst.msk [vmem:[%s185 + $0x70] sm:$0xff] %vm1218, %v1216
          %1234 = vst.msk [vmem:[%s185 + $0x78] sm:$0xff] %vm1218, %v1217
          %v1235 = vsel %vm371, %v373, %v370
          %v1236 = vsel %vm374, %v376, %v1235
          %v1237 = vsel %vm377, %v379, %v1236
          %v1238 = vsel %vm380, %v382, %v1237
          %v1239 = vsel %vm383, %v385, %v1238
          %v1240 = vsel %vm386, %v388, %v1239
          %v1241 = vsel %vm389, %v369, %v1240
          %vm1242 = vcmp.ne.s32.totalorder %v1241, 0
          %vm1243 = vmand %vm245, %vm1242
          %vm1244 = vmand %vm246, %vm1242
          %vm1245 = vmand %vm247, %vm1242
          %vm1246 = vmand %vm248, %vm1242
          %vm1247 = vmand %vm249, %vm1242
          %vm1248 = vmand %vm250, %vm1242
          %vm1249 = vmand %vm251, %vm1242
          %vm1250 = vmand %vm252, %vm1242
          %vm1251 = vmand %vm253, %vm1242
          %vm1252 = vmand %vm254, %vm1242
          %vm1253 = vmand %vm255, %vm1242
          %vm1254 = vmand %vm256, %vm1242
          %vm1255 = vmand %vm257, %vm1242
          %vm1256 = vmand %vm258, %vm1242
          %vm1257 = vmand %vm259, %vm1242
          %vm1258 = vmand %vm260, %vm1242
          %v1259 = vsel %vm1243, %v411, 0.0
          %v1260 = vsel %vm1244, %v411, 0.0
          %v1261 = vsel %vm1245, %v411, 0.0
          %v1262 = vsel %vm1246, %v411, 0.0
          %v1263 = vsel %vm1247, %v411, 0.0
          %v1264 = vsel %vm1248, %v411, 0.0
          %v1265 = vsel %vm1249, %v411, 0.0
          %v1266 = vsel %vm1250, %v411, 0.0
          %v1267 = vsel %vm1251, %v411, 0.0
          %v1268 = vsel %vm1252, %v411, 0.0
          %v1269 = vsel %vm1253, %v411, 0.0
          %v1270 = vsel %vm1254, %v411, 0.0
          %v1271 = vsel %vm1255, %v411, 0.0
          %v1272 = vsel %vm1256, %v411, 0.0
          %v1273 = vsel %vm1257, %v411, 0.0
          %v1274 = vsel %vm1258, %v411, 0.0
          %1275 = vmax.xlane.f32.xlu0 %v1259
          %v1276 = vpop.xlane.xlu0 %1275
          %1277 = vmax.xlane.f32.xlu0 %v1260
          %v1278 = vpop.xlane.xlu0 %1277
          %1279 = vmax.xlane.f32.xlu0 %v1261
          %v1280 = vpop.xlane.xlu0 %1279
          %1281 = vmax.xlane.f32.xlu0 %v1262
          %v1282 = vpop.xlane.xlu0 %1281
          %1283 = vmax.xlane.f32.xlu0 %v1263
          %v1284 = vpop.xlane.xlu0 %1283
          %1285 = vmax.xlane.f32.xlu0 %v1264
          %v1286 = vpop.xlane.xlu0 %1285
          %1287 = vmax.xlane.f32.xlu0 %v1265
          %v1288 = vpop.xlane.xlu0 %1287
          %1289 = vmax.xlane.f32.xlu0 %v1266
          %v1290 = vpop.xlane.xlu0 %1289
          %1291 = vmax.xlane.f32.xlu0 %v1267
          %v1292 = vpop.xlane.xlu0 %1291
          %1293 = vmax.xlane.f32.xlu0 %v1268
          %v1294 = vpop.xlane.xlu0 %1293
          %1295 = vmax.xlane.f32.xlu0 %v1269
          %v1296 = vpop.xlane.xlu0 %1295
          %1297 = vmax.xlane.f32.xlu0 %v1270
          %v1298 = vpop.xlane.xlu0 %1297
          %1299 = vmax.xlane.f32.xlu0 %v1271
          %v1300 = vpop.xlane.xlu0 %1299
          %1301 = vmax.xlane.f32.xlu0 %v1272
          %v1302 = vpop.xlane.xlu0 %1301
          %1303 = vmax.xlane.f32.xlu0 %v1273
          %v1304 = vpop.xlane.xlu0 %1303
          %1305 = vmax.xlane.f32.xlu0 %v1274
          %v1306 = vpop.xlane.xlu0 %1305
          %v1307 = vld [vmem:[%s185] sm:$0xff]
          %v1308 = vld [vmem:[%s185 + $0x8] sm:$0xff]
          %v1309 = vld [vmem:[%s185 + $0x10] sm:$0xff]
          %v1310 = vld [vmem:[%s185 + $0x18] sm:$0xff]
          %v1311 = vld [vmem:[%s185 + $0x20] sm:$0xff]
          %v1312 = vld [vmem:[%s185 + $0x28] sm:$0xff]
          %v1313 = vld [vmem:[%s185 + $0x30] sm:$0xff]
          %v1314 = vld [vmem:[%s185 + $0x38] sm:$0xff]
          %v1315 = vld [vmem:[%s185 + $0x40] sm:$0xff]
          %v1316 = vld [vmem:[%s185 + $0x48] sm:$0xff]
          %v1317 = vld [vmem:[%s185 + $0x50] sm:$0xff]
          %v1318 = vld [vmem:[%s185 + $0x58] sm:$0xff]
          %v1319 = vld [vmem:[%s185 + $0x60] sm:$0xff]
          %v1320 = vld [vmem:[%s185 + $0x68] sm:$0xff]
          %v1321 = vld [vmem:[%s185 + $0x70] sm:$0xff]
          %v1322 = vld [vmem:[%s185 + $0x78] sm:$0xff]
          %v1323 = vmax.f32 %v1307, %v1276
          %v1324 = vmax.f32 %v1308, %v1278
          %v1325 = vmax.f32 %v1309, %v1280
          %v1326 = vmax.f32 %v1310, %v1282
          %v1327 = vmax.f32 %v1311, %v1284
          %v1328 = vmax.f32 %v1312, %v1286
          %v1329 = vmax.f32 %v1313, %v1288
          %v1330 = vmax.f32 %v1314, %v1290
          %v1331 = vmax.f32 %v1315, %v1292
          %v1332 = vmax.f32 %v1316, %v1294
          %v1333 = vmax.f32 %v1317, %v1296
          %v1334 = vmax.f32 %v1318, %v1298
          %v1335 = vmax.f32 %v1319, %v1300
          %v1336 = vmax.f32 %v1320, %v1302
          %v1337 = vmax.f32 %v1321, %v1304
          %v1338 = vmax.f32 %v1322, %v1306
          %vm1339 = vcmask 64568
          %1340 = vst.msk [vmem:[%s185] sm:$0xff] %vm1339, %v1323
          %1341 = vst.msk [vmem:[%s185 + $0x8] sm:$0xff] %vm1339, %v1324
          %1342 = vst.msk [vmem:[%s185 + $0x10] sm:$0xff] %vm1339, %v1325
          %1343 = vst.msk [vmem:[%s185 + $0x18] sm:$0xff] %vm1339, %v1326
          %1344 = vst.msk [vmem:[%s185 + $0x20] sm:$0xff] %vm1339, %v1327
          %1345 = vst.msk [vmem:[%s185 + $0x28] sm:$0xff] %vm1339, %v1328
          %1346 = vst.msk [vmem:[%s185 + $0x30] sm:$0xff] %vm1339, %v1329
          %1347 = vst.msk [vmem:[%s185 + $0x38] sm:$0xff] %vm1339, %v1330
          %1348 = vst.msk [vmem:[%s185 + $0x40] sm:$0xff] %vm1339, %v1331
          %1349 = vst.msk [vmem:[%s185 + $0x48] sm:$0xff] %vm1339, %v1332
          %1350 = vst.msk [vmem:[%s185 + $0x50] sm:$0xff] %vm1339, %v1333
          %1351 = vst.msk [vmem:[%s185 + $0x58] sm:$0xff] %vm1339, %v1334
          %1352 = vst.msk [vmem:[%s185 + $0x60] sm:$0xff] %vm1339, %v1335
          %1353 = vst.msk [vmem:[%s185 + $0x68] sm:$0xff] %vm1339, %v1336
          %1354 = vst.msk [vmem:[%s185 + $0x70] sm:$0xff] %vm1339, %v1337
          %1355 = vst.msk [vmem:[%s185 + $0x78] sm:$0xff] %vm1339, %v1338
        $region41: #{tpu_custom_call.1} parent=27 // loop_footer
          %s229 = sadd.s32 1, %s225
        $region42: #{tpu_custom_call.1} parent=27 // loop_footer_branch
          %224 = sbr.rel target = $region38
        $region43: #{tpu_custom_call.1} parent=27 // loop_exit
          _
        %s1356 = sand.u32 %s73, 1
        %s1357 = scalar_lea.sflag [#allocation4], %s1356
        %s1358 = sand.u32 %s73, 1
        %s1359 = smul.addr %s1358, 8
        %s1360 = scalar_lea.vmem [#allocation7], %s1359
        %s1361 = sand.u32 %s99, 1
        %s1362 = scalar_lea.sflag [#allocation9], %s1361
        %s1363 = sand.u32 %s99, 1
        %s1364 = smul.addr %s1363, 128
        %s1365 = scalar_lea.vmem [#allocation8], %s1364
        // Predicated region
        $region44: #{tpu_custom_call.1} parent=27 // pred_check
          %p1366 = pneg %p83
        $region45: #{tpu_custom_call.1} parent=27 // pred_check_branch
          %1368 = sbr.rel (%p1366) target = $region47
        $region46: #{tpu_custom_call.1} parent=27 // pred_region
          %s1370 = ssub.s32 128, 128
          %1371 = vsyncadd %s1357, %s1370
          %s1372 = smul.addr %s23, 128
          %s1373 = scalar_lea.hbm %s2, %s1372
          %s1375 = sshll.u32 %s1360, 4
          %s1376 = int_to_ptr.vmem [resolvable:$true] %s1375
          %1378 = dma.vmem_to_hbm [thread:$0]  %s1376, 128, %s1373, %s1357
        $region47: #{tpu_custom_call.1} parent=27 // pred_fallthru
          _
        // Predicated region
        $region48: #{tpu_custom_call.1} parent=27 // pred_check
          %p1379 = pneg %p109
        $region49: #{tpu_custom_call.1} parent=27 // pred_check_branch
          %1381 = sbr.rel (%p1379) target = $region51
        $region50: #{tpu_custom_call.1} parent=27 // pred_region
          %s1383 = ssub.s32 2048, 2048
          %1384 = vsyncadd %s1362, %s1383
          %s1385 = smul.addr %s23, 16
          %s1386 = smul.addr %s1385, 128
          %s1387 = scalar_lea.hbm %s3, %s1386
          %s1388 = sshll.u32 %s1365, 4
          %s1389 = int_to_ptr.vmem [resolvable:$true] %s1388
          %1394 = dma.vmem_to_hbm [thread:$0]  %s1389, 2048, %s1387, %s1362, 128, 128, 8
        $region51: #{tpu_custom_call.1} parent=27 // pred_fallthru
          _
      $region28: #{tpu_custom_call.1} parent=5 // pred_fallthru
        _
      %p1395 = scmp.le.s32.totalorder 2, %s18
      // Predicated region
      $region52: #{tpu_custom_call.1} parent=5 // pred_check
        %p1396 = pneg %p1395
      $region53: #{tpu_custom_call.1} parent=5 // pred_check_branch
        %1398 = sbr.rel (%p1396) target = $region55
      $region54: #{tpu_custom_call.1} parent=5 // pred_region
        %s1399 = ssub.s32 %s18, 2
        // Predicated region
        $region56: #{tpu_custom_call.1} parent=54 // pred_check
          %p1400 = pneg %p89
        $region57: #{tpu_custom_call.1} parent=54 // pred_check_branch
          %1402 = sbr.rel (%p1400) target = $region59
        $region58: #{tpu_custom_call.1} parent=54 // pred_region
          %s1403 = sand.u32 %s74, 1
          %s1404 = scalar_lea.sflag [#allocation4], %s1403
          %s1405 = sand.u32 %s74, 1
          %s1406 = smul.addr %s1405, 8
          %s1407 = scalar_lea.vmem [#allocation7], %s1406
          %1408 = dma.done %s1404, 128
        $region59: #{tpu_custom_call.1} parent=54 // pred_fallthru
          _
        // Predicated region
        $region60: #{tpu_custom_call.1} parent=54 // pred_check
          %p1409 = pneg %p115
        $region61: #{tpu_custom_call.1} parent=54 // pred_check_branch
          %1411 = sbr.rel (%p1409) target = $region63
        $region62: #{tpu_custom_call.1} parent=54 // pred_region
          %s1412 = sand.u32 %s100, 1
          %s1413 = scalar_lea.sflag [#allocation9], %s1412
          %s1414 = sand.u32 %s100, 1
          %s1415 = smul.addr %s1414, 128
          %s1416 = scalar_lea.vmem [#allocation8], %s1415
          %1417 = dma.done %s1413, 2048
        $region63: #{tpu_custom_call.1} parent=54 // pred_fallthru
          _
      $region55: #{tpu_custom_call.1} parent=5 // pred_fallthru
        _
    $region6: #{tpu_custom_call.1} parent=1 // loop_footer
      %s22 = sadd.s32 1, %s18
    $region7: #{tpu_custom_call.1} parent=1 // loop_footer_branch
      %17 = sbr.rel target = $region3
    $region8: #{tpu_custom_call.1} parent=1 // loop_exit
      _
    %1418 = vsyncpa [#allocation3], 1
    %s1419 = scalar_lea.sflag [#allocation3], 1
    %1420 = vsyncpa %s1419, 1
    %1421 = vsyncpa [#allocation6], 1
    %1422 = vsyncpa [#allocation4], 1
    %s1423 = scalar_lea.sflag [#allocation4], 1
    %1424 = vsyncpa %s1423, 1
    %1425 = vsyncpa [#allocation9], 1
    %s1426 = scalar_lea.sflag [#allocation9], 1
    %1427 = vsyncpa %s1426, 1

</llo_original>
